<compile_context>
chip_gen: v5e
topology: v5e:2x2
jax: 0.10.0
libtpu: 0.0.40
codegen_flags: <defaults>
</compile_context>

<pallas_src>
import functools
import math

import jax
import jax.numpy as jnp
import numpy as np
from jax.experimental import pallas as pl
from jax.experimental.pallas import tpu as pltpu

# ---- synthetic model dimensions (small stand-ins for SD components) --------
IMAGE_SIZE = (32, 24)          # (H, W): keeps the 4:3 ratio of (512, 384)
VAE_FACTOR = 4                 # spatial down/up factor of the toy VAE
LAT_H, LAT_W = IMAGE_SIZE[0] // VAE_FACTOR, IMAGE_SIZE[1] // VAE_FACTOR
L_TOK = LAT_H * LAT_W          # latent tokens (48)
C_IMG = 3
C_LAT = 4
C_PAD = 128                    # latent channels zero-padded to a full lane dim
D_MODEL = 128                  # prompt-embedding / unet hidden dim
SEQ = 8                        # prompt token count
F2C = VAE_FACTOR * VAE_FACTOR * C_IMG   # space-to-depth image features (48)
VAE_SCALING = 0.18215
GUIDANCE_SCALE = 7.5
NUM_TRAIN_TIMESTEPS = 1000
NUM_INFERENCE_STEPS = 5
STRENGTH = 0.55

# indices of the stacked (6, D, D) UNet weights resident in VMEM
W_IN, W_Q, W_O, W_F1, W_F2, W_OUT = range(6)


# ---- scheduler (DDIM, eta=0) -- python/np glue, compile-time scalars -------
def _make_scheduler():
    betas = np.linspace(0.00085 ** 0.5, 0.012 ** 0.5, NUM_TRAIN_TIMESTEPS,
                        dtype=np.float64) ** 2
    alphas_cumprod = np.cumprod(1.0 - betas)
    step_ratio = NUM_TRAIN_TIMESTEPS // NUM_INFERENCE_STEPS
    timesteps = (np.arange(0, NUM_INFERENCE_STEPS) * step_ratio
                 ).round()[::-1].astype(np.int64)
    # pipe.get_timesteps(num_inference_steps, strength)
    init_timestep = min(int(NUM_INFERENCE_STEPS * STRENGTH), NUM_INFERENCE_STEPS)
    t_start = max(NUM_INFERENCE_STEPS - init_timestep, 0)
    timesteps = timesteps[t_start:]
    return alphas_cumprod, timesteps, step_ratio


def _timestep_embedding_np(t, dim):
    half = dim // 2
    freqs = np.exp(-math.log(10000.0) * np.arange(half, dtype=np.float64) / half)
    ang = float(t) * freqs
    return np.concatenate([np.sin(ang), np.cos(ang)]).astype(np.float32)


def _full_spec(shape):
    nd = len(shape)
    return pl.BlockSpec(tuple(shape), lambda i, _nd=nd: (0,) * _nd)


# ---- the single fused kernel ------------------------------------------------
def _fused_diffusion_kernel(
        x_ref, noise_ref, tsin_ref, pe_ref,
        w_enc_ref, b_enc_ref, w_t1_ref, b_t1_ref, w_t2_ref, b_t2_ref,
        w_kv_ref, b_kv_ref, w_stack_ref, b_stack_ref, w_dec_ref, b_dec_ref,
        out_ref,
        lat_ref, kv_ref, *,
        n_steps, seq, d_model, attn_scale, guidance, scaling,
        sqrt_a0, sqrt_1ma0, coef_lat_tab, coef_eps_tab):
    f32, bf16 = jnp.float32, jnp.bfloat16
    i = pl.program_id(0)

    # ---- step 0: toy VAE encode + add_noise, fused K/V projection ----------
    @pl.when(i == 0)
    def _prologue():
        lat0 = jnp.dot(x_ref[...].astype(bf16), w_enc_ref[...],
                       preferred_element_type=f32) + b_enc_ref[...]
        lat0 = lat0 * scaling
        lat_ref[...] = sqrt_a0 * lat0 + sqrt_1ma0 * noise_ref[...]
        kv = jnp.dot(pe_ref[...].astype(bf16), w_kv_ref[...],
                     preferred_element_type=f32) + b_kv_ref[...]
        kv_ref[...] = kv.astype(bf16)          # loop-invariant, stays in VMEM

    # ---- timestep MLP (silu); compute all (tiny) rows, select current ------
    t1 = jnp.dot(tsin_ref[...].astype(bf16), w_t1_ref[...],
                 preferred_element_type=f32) + b_t1_ref[...]
    t1 = t1 * jax.nn.sigmoid(t1)
    temb_all = jnp.dot(t1.astype(bf16), w_t2_ref[...],
                       preferred_element_type=f32) + b_t2_ref[...]   # (n_steps, D)
    row_ids = jax.lax.broadcasted_iota(jnp.int32, temb_all.shape, 0)
    temb = jnp.sum(jnp.where(row_ids == i, temb_all, 0.0),
                   axis=0, keepdims=True)                            # (1, D)

    lat = lat_ref[...]                                               # (L, 128)

    def proj(a, idx):
        return jnp.dot(a.astype(bf16), w_stack_ref[idx],
                       preferred_element_type=f32) + b_stack_ref[idx]

    # pre-attention path is identical for both CFG halves (latents duplicated
    # in the reference pipeline) -> compute once.
    h = proj(lat, W_IN) + temb                                       # (L, D)
    q = proj(h, W_Q).astype(bf16)                                    # (L, D)

    kv = kv_ref[...]                                                 # (2S, 2D) bf16
    k_all = kv[:, :d_model]
    v_all = kv[:, d_model:]
    # QK^T batched over both CFG halves in one MXU pass.
    s_all = jnp.einsum("ld,sd->ls", q, k_all,
                       preferred_element_type=f32) * attn_scale      # (L, 2S)

    def attend(half):                                                # static unroll
        s = s_all[:, half * seq:(half + 1) * seq]
        m = jnp.max(s, axis=-1, keepdims=True)
        p = jnp.exp(s - m)
        p = p * pl.reciprocal(jnp.sum(p, axis=-1, keepdims=True), approx=True)
        return jnp.einsum("ls,sd->ld", p.astype(bf16),
                          v_all[half * seq:(half + 1) * seq],
                          preferred_element_type=f32)                # (L, D)

    # batch both CFG halves through the post-attention MLP (2L rows / matmul).
    attn = jnp.concatenate([attend(0), attend(1)], axis=0)           # (2L, D)
    h2 = jnp.concatenate([h, h], axis=0)
    hh = h2 + proj(attn, W_O)
    ff = proj(hh, W_F1)
    ff = ff * jax.nn.sigmoid(ff)                                     # silu
    hh = hh + proj(ff, W_F2)
    eps2 = proj(hh, W_OUT)                                           # (2L, 128)

    n_tok = lat.shape[0]
    eps_u = eps2[:n_tok]                                             # uncond half
    eps_t = eps2[n_tok:]                                             # text half
    eps = eps_u + guidance * (eps_t - eps_u)                         # CFG combine

    # DDIM(eta=0) update; per-step coefficients are compile-time constants
    # selected with a tiny unrolled switch on program_id.
    coef_lat = jnp.float32(coef_lat_tab[0])
    coef_eps = jnp.float32(coef_eps_tab[0])
    for s in range(1, n_steps):
        coef_lat = jnp.where(i == s, jnp.float32(coef_lat_tab[s]), coef_lat)
        coef_eps = jnp.where(i == s, jnp.float32(coef_eps_tab[s]), coef_eps)
    new_lat = coef_lat * lat + coef_eps * eps
    lat_ref[...] = new_lat

    # ---- last step: toy VAE decode (1x1 conv + tanh), lane-dense output ----
    @pl.when(i == n_steps - 1)
    def _epilogue():
        z = new_lat * (1.0 / scaling)
        dec = jnp.dot(z.astype(bf16), w_dec_ref[...],
                      preferred_element_type=f32) + b_dec_ref[...]
        out_ref[...] = jnp.tanh(dec)


# ---- weight preparation: pad to lane-dense shapes, cast to bf16 ONCE --------
def _prepare_weights(p):
    bf16, f32 = jnp.bfloat16, jnp.float32
    D = D_MODEL

    def pad2(w, rows, cols):
        return jnp.pad(w, ((0, rows - w.shape[0]), (0, cols - w.shape[1])))

    def pad_vec(b, n):
        return jnp.pad(b, (0, n - b.shape[0]))

    w_stack = jnp.stack([
        pad2(p["w_in"], C_PAD, D), p["w_q"], p["w_o"], p["w_f1"], p["w_f2"],
        pad2(p["w_out"], D, C_PAD)]).astype(bf16)                    # (6, D, D)
    b_stack = jnp.stack([
        p["b_in"], p["b_q"], p["b_o"], p["b_f1"], p["b_f2"],
        pad_vec(p["b_out"], C_PAD)]).astype(f32)                     # (6, D)

    return {
        "w_stack": w_stack, "b_stack": b_stack,
        "w_enc": pad2(p["w_enc"], C_PAD, C_PAD).astype(bf16),
        "b_enc": pad_vec(p["b_enc"], C_PAD).reshape(1, C_PAD).astype(f32),
        "w_t1": p["w_t1"].astype(bf16),
        "b_t1": p["b_t1"].reshape(1, D).astype(f32),
        "w_t2": p["w_t2"].astype(bf16),
        "b_t2": p["b_t2"].reshape(1, D).astype(f32),
        "w_kv": jnp.concatenate([p["w_k"], p["w_v"]], axis=1).astype(bf16),
        "b_kv": jnp.concatenate([p["b_k"], p["b_v"]]).reshape(1, 2 * D).astype(f32),
        "w_dec": pad2(p["w_dec"], C_PAD, C_PAD).astype(bf16),
        "b_dec": pad_vec(p["b_dec"], C_PAD).reshape(1, C_PAD).astype(f32),
    }


# ---- PromptModel.forward ----------------------------------------------------
def prompt_model_forward(params, start_image, init_noise):
    alphas_cumprod, timesteps, step_ratio = _make_scheduler()
    n_steps = len(timesteps)
    assert n_steps >= 1
    pw = _prepare_weights(params)

    # do_classifier_free_guidance: cat([negative_prompt_embeds, prompt_embeds])
    prompt_embeds = jnp.concatenate([params["fc2"], params["fc1"]], axis=0)
    pe_flat = prompt_embeds.reshape(2 * SEQ, D_MODEL).astype(jnp.float32)

    # image_processor.preprocess: [0,1] -> [-1,1]; NCHW -> NHWC; space-to-depth
    img = start_image * 2.0 - 1.0
    x = jnp.transpose(img, (0, 2, 3, 1))
    B, H, W, C = x.shape
    f = VAE_FACTOR
    x = x.reshape(B, H // f, f, W // f, f, C).transpose(0, 1, 3, 2, 4, 5)
    x = x.reshape(L_TOK, F2C).astype(jnp.float32)
    x = jnp.pad(x, ((0, 0), (0, C_PAD - F2C)))                 # lane-dense (48,128)

    # prepare_latents noise: NCHW -> (tokens, C_LAT) -> lane-dense pad
    noise = jnp.transpose(init_noise, (0, 2, 3, 1)).reshape(L_TOK, C_LAT)
    noise_p = jnp.pad(noise, ((0, 0), (0, C_PAD - C_LAT))).astype(jnp.float32)

    # sinusoidal timestep embeddings for all (compile-time) inference steps
    tsin = jnp.asarray(
        np.stack([_timestep_embedding_np(int(t), D_MODEL) for t in timesteps]),
        jnp.float32)                                           # (n_steps, D)

    # scheduler.add_noise + DDIM(eta=0) coefficients (compile-time scalars)
    t0 = int(timesteps[0])
    a0 = float(alphas_cumprod[t0])
    coef_lat_tab, coef_eps_tab = [], []
    for t in timesteps:
        t = int(t)
        prev_t = t - step_ratio
        a_t = float(alphas_cumprod[t])
        a_prev = float(alphas_cumprod[prev_t]) if prev_t >= 0 else 1.0
        coef_lat_tab.append(math.sqrt(a_prev / a_t))
        coef_eps_tab.append(math.sqrt(1.0 - a_prev)
                            - math.sqrt(a_prev * (1.0 - a_t) / a_t))

    args = (x, noise_p, tsin, pe_flat,
            pw["w_enc"], pw["b_enc"], pw["w_t1"], pw["b_t1"],
            pw["w_t2"], pw["b_t2"], pw["w_kv"], pw["b_kv"],
            pw["w_stack"], pw["b_stack"], pw["w_dec"], pw["b_dec"])

    dec_pad = pl.pallas_call(
        functools.partial(
            _fused_diffusion_kernel,
            n_steps=n_steps, seq=SEQ, d_model=D_MODEL,
            attn_scale=1.0 / math.sqrt(D_MODEL), guidance=GUIDANCE_SCALE,
            scaling=VAE_SCALING, sqrt_a0=math.sqrt(a0),
            sqrt_1ma0=math.sqrt(1.0 - a0),
            coef_lat_tab=tuple(coef_lat_tab),
            coef_eps_tab=tuple(coef_eps_tab)),
        out_shape=jax.ShapeDtypeStruct((L_TOK, C_PAD), jnp.float32),
        grid=(n_steps,),
        in_specs=[_full_spec(a.shape) for a in args],
        out_specs=_full_spec((L_TOK, C_PAD)),
        scratch_shapes=[pltpu.VMEM((L_TOK, C_PAD), jnp.float32),       # latents
                        pltpu.VMEM((2 * SEQ, 2 * D_MODEL), jnp.bfloat16)],  # K|V
        compiler_params=pltpu.CompilerParams(
            dimension_semantics=("arbitrary",)),
    )(*args)

    # drop lane padding + depth-to-space(4) back to an NCHW image
    dec = dec_pad[:, :F2C]
    dec = dec.reshape(1, LAT_H, LAT_W, f, f, C_IMG).transpose(0, 1, 3, 2, 4, 5)
    dec = dec.reshape(1, IMAGE_SIZE[0], IMAGE_SIZE[1], C_IMG)
    return jnp.transpose(dec, (0, 3, 1, 2))                      # NCHW


# ---- deterministic parameter init ------------------------------------------
def init_params(key):
    keys = jax.random.split(key, 16)
    D = D_MODEL

    def w(k, shape, scale=0.02):
        return scale * jax.random.normal(k, shape, jnp.float32)

    zeros = lambda n: jnp.zeros((n,), jnp.float32)
    return {
        # learnable prompt / negative-prompt embeddings (fc1 / fc2)
        "fc1": w(keys[0], (1, SEQ, D), 1.0),
        "fc2": w(keys[1], (1, SEQ, D), 1.0),
        # toy VAE
        "w_enc": w(keys[2], (F2C, C_LAT)), "b_enc": zeros(C_LAT),
        "w_dec": w(keys[3], (C_LAT, F2C)), "b_dec": zeros(F2C),
        # toy UNet
        "w_in": w(keys[4], (C_LAT, D)), "b_in": zeros(D),
        "w_t1": w(keys[5], (D, D)), "b_t1": zeros(D),
        "w_t2": w(keys[6], (D, D)), "b_t2": zeros(D),
        "w_q": w(keys[7], (D, D)), "b_q": zeros(D),
        "w_k": w(keys[8], (D, D)), "b_k": zeros(D),
        "w_v": w(keys[9], (D, D)), "b_v": zeros(D),
        "w_o": w(keys[10], (D, D)), "b_o": zeros(D),
        "w_f1": w(keys[11], (D, D)), "b_f1": zeros(D),
        "w_f2": w(keys[12], (D, D)), "b_f2": zeros(D),
        "w_out": w(keys[13], (D, C_LAT)), "b_out": zeros(C_LAT),
    }


if __name__ == "__main__":
    key = jax.random.PRNGKey(0)
    k_param, k_img, k_noise = jax.random.split(key, 3)
    params = init_params(k_param)

    # stand-in for Resize(IMAGE_SIZE)+ToTensor() of the start image: [0,1] NCHW
    start_image = jax.random.uniform(
        k_img, (1, C_IMG, IMAGE_SIZE[0], IMAGE_SIZE[1]), jnp.float32)
    # deterministic prepare_latents noise
    init_noise = jax.random.normal(
        k_noise, (1, C_LAT, LAT_H, LAT_W), jnp.float32)

    fwd = jax.jit(prompt_model_forward)
    out = jax.block_until_ready(fwd(params, start_image, init_noise))

    assert out.shape == (1, C_IMG, IMAGE_SIZE[0], IMAGE_SIZE[1])
    assert bool(jnp.all(jnp.isfinite(out)))
    print("KERNEL_OK")
</pallas_src>

<mosaic_0001>
module attributes {stable_mosaic.version = 11 : i64} {
  func.func @_fused_diffusion_kernel(%arg0: i32, %arg1: memref<48x128xf32, #tpu.memory_space<vmem>>, %arg2: memref<48x128xf32, #tpu.memory_space<vmem>>, %arg3: memref<2x128xf32, #tpu.memory_space<vmem>>, %arg4: memref<16x128xf32, #tpu.memory_space<vmem>>, %arg5: memref<128x128xbf16, #tpu.memory_space<vmem>>, %arg6: memref<1x128xf32, #tpu.memory_space<vmem>>, %arg7: memref<128x128xbf16, #tpu.memory_space<vmem>>, %arg8: memref<1x128xf32, #tpu.memory_space<vmem>>, %arg9: memref<128x128xbf16, #tpu.memory_space<vmem>>, %arg10: memref<1x128xf32, #tpu.memory_space<vmem>>, %arg11: memref<128x256xbf16, #tpu.memory_space<vmem>>, %arg12: memref<1x256xf32, #tpu.memory_space<vmem>>, %arg13: memref<6x128x128xbf16, #tpu.memory_space<vmem>>, %arg14: memref<6x128xf32, #tpu.memory_space<vmem>>, %arg15: memref<128x128xbf16, #tpu.memory_space<vmem>>, %arg16: memref<1x128xf32, #tpu.memory_space<vmem>>, %arg17: memref<48x128xf32, #tpu.memory_space<vmem>>, %arg18: memref<48x128xf32, #tpu.memory_space<vmem>>, %arg19: memref<16x256xbf16, #tpu.memory_space<vmem>>) attributes {dimension_semantics = [#tpu.dimension_semantics<arbitrary>], iteration_bounds = array<i64: 2>, scalar_prefetch = 0 : i64, scratch_operands = 2 : i64, tpu.core_type = #tpu.core_type<tc>, window_params = [{pipeline_mode = #tpu.pipeline_mode<synchronous>, transform_indices = @transform_0, window_bounds = array<i64: 48, 128>}, {pipeline_mode = #tpu.pipeline_mode<synchronous>, transform_indices = @transform_1, window_bounds = array<i64: 48, 128>}, {pipeline_mode = #tpu.pipeline_mode<synchronous>, transform_indices = @transform_2, window_bounds = array<i64: 2, 128>}, {pipeline_mode = #tpu.pipeline_mode<synchronous>, transform_indices = @transform_3, window_bounds = array<i64: 16, 128>}, {pipeline_mode = #tpu.pipeline_mode<synchronous>, transform_indices = @transform_4, window_bounds = array<i64: 128, 128>}, {pipeline_mode = #tpu.pipeline_mode<synchronous>, transform_indices = @transform_5, window_bounds = array<i64: 1, 128>}, {pipeline_mode = #tpu.pipeline_mode<synchronous>, transform_indices = @transform_6, window_bounds = array<i64: 128, 128>}, {pipeline_mode = #tpu.pipeline_mode<synchronous>, transform_indices = @transform_7, window_bounds = array<i64: 1, 128>}, {pipeline_mode = #tpu.pipeline_mode<synchronous>, transform_indices = @transform_8, window_bounds = array<i64: 128, 128>}, {pipeline_mode = #tpu.pipeline_mode<synchronous>, transform_indices = @transform_9, window_bounds = array<i64: 1, 128>}, {pipeline_mode = #tpu.pipeline_mode<synchronous>, transform_indices = @transform_10, window_bounds = array<i64: 128, 256>}, {pipeline_mode = #tpu.pipeline_mode<synchronous>, transform_indices = @transform_11, window_bounds = array<i64: 1, 256>}, {pipeline_mode = #tpu.pipeline_mode<synchronous>, transform_indices = @transform_12, window_bounds = array<i64: 6, 128, 128>}, {pipeline_mode = #tpu.pipeline_mode<synchronous>, transform_indices = @transform_13, window_bounds = array<i64: 6, 128>}, {pipeline_mode = #tpu.pipeline_mode<synchronous>, transform_indices = @transform_14, window_bounds = array<i64: 128, 128>}, {pipeline_mode = #tpu.pipeline_mode<synchronous>, transform_indices = @transform_15, window_bounds = array<i64: 1, 128>}, {pipeline_mode = #tpu.pipeline_mode<synchronous>, transform_indices = @transform_16, window_bounds = array<i64: 48, 128>}]} {
    %c0_i32 = arith.constant 0 : i32
    %0 = arith.cmpi eq, %arg0, %c0_i32 : i32
    %1 = arith.extui %0 : i1 to i32
    %c0_i32_0 = arith.constant 0 : i32
    %2 = arith.cmpi ne, %1, %c0_i32_0 : i32
    scf.if %2 {
      %c0_68 = arith.constant 0 : index
      %c0_69 = arith.constant 0 : index
      %150 = vector.load %arg1[%c0_68, %c0_69] : memref<48x128xf32, #tpu.memory_space<vmem>>, vector<48x128xf32>
      %151 = arith.truncf %150 : vector<48x128xf32> to vector<48x128xbf16>
      %c0_70 = arith.constant 0 : index
      %c0_71 = arith.constant 0 : index
      %152 = vector.load %arg5[%c0_70, %c0_71] : memref<128x128xbf16, #tpu.memory_space<vmem>>, vector<128x128xbf16>
      %cst_72 = arith.constant dense<0.000000e+00> : vector<48x128xf32>
      %153 = tpu.matmul %151, %152, %cst_72 {dimension_numbers = #tpu.dot_dimension_numbers<[1], [0], [0], [1], [0, 0, 1, 1], [], []>} : vector<48x128xbf16>, vector<128x128xbf16>, vector<48x128xf32> -> vector<48x128xf32>
      %c0_73 = arith.constant 0 : index
      %c0_74 = arith.constant 0 : index
      %154 = vector.load %arg6[%c0_73, %c0_74] : memref<1x128xf32, #tpu.memory_space<vmem>>, vector<1x128xf32>
      %155 = vector.broadcast %154 : vector<1x128xf32> to vector<48x128xf32>
      %156 = arith.addf %153, %155 : vector<48x128xf32>
      %cst_75 = arith.constant 1.821500e-01 : f32
      %157 = vector.broadcast %cst_75 : f32 to vector<48x128xf32>
      %158 = arith.mulf %156, %157 : vector<48x128xf32>
      %cst_76 = arith.constant 0.868154406 : f32
      %159 = vector.broadcast %cst_76 : f32 to vector<48x128xf32>
      %160 = arith.mulf %159, %158 : vector<48x128xf32>
      %c0_77 = arith.constant 0 : index
      %c0_78 = arith.constant 0 : index
      %161 = vector.load %arg2[%c0_77, %c0_78] : memref<48x128xf32, #tpu.memory_space<vmem>>, vector<48x128xf32>
      %cst_79 = arith.constant 0.49629423 : f32
      %162 = vector.broadcast %cst_79 : f32 to vector<48x128xf32>
      %163 = arith.mulf %162, %161 : vector<48x128xf32>
      %164 = arith.addf %160, %163 : vector<48x128xf32>
      %c0_80 = arith.constant 0 : index
      %c0_81 = arith.constant 0 : index
      %165 = vector.load %arg18[%c0_80, %c0_81] : memref<48x128xf32, #tpu.memory_space<vmem>>, vector<48x128xf32>
      tpu.vector_store %arg18[%c0_80, %c0_81], %164 {strides = array<i32>} : memref<48x128xf32, #tpu.memory_space<vmem>>, vector<48x128xf32>,
      %c0_82 = arith.constant 0 : index
      %c0_83 = arith.constant 0 : index
      %166 = vector.load %arg4[%c0_82, %c0_83] : memref<16x128xf32, #tpu.memory_space<vmem>>, vector<16x128xf32>
      %167 = arith.truncf %166 : vector<16x128xf32> to vector<16x128xbf16>
      %c0_84 = arith.constant 0 : index
      %c0_85 = arith.constant 0 : index
      %168 = vector.load %arg11[%c0_84, %c0_85] : memref<128x256xbf16, #tpu.memory_space<vmem>>, vector<128x256xbf16>
      %cst_86 = arith.constant dense<0.000000e+00> : vector<16x256xf32>
      %169 = tpu.matmul %167, %168, %cst_86 {dimension_numbers = #tpu.dot_dimension_numbers<[1], [0], [0], [1], [0, 0, 1, 1], [], []>} : vector<16x128xbf16>, vector<128x256xbf16>, vector<16x256xf32> -> vector<16x256xf32>
      %c0_87 = arith.constant 0 : index
      %c0_88 = arith.constant 0 : index
      %170 = vector.load %arg12[%c0_87, %c0_88] : memref<1x256xf32, #tpu.memory_space<vmem>>, vector<1x256xf32>
      %171 = vector.broadcast %170 : vector<1x256xf32> to vector<16x256xf32>
      %172 = arith.addf %169, %171 : vector<16x256xf32>
      %173 = arith.truncf %172 : vector<16x256xf32> to vector<16x256xbf16>
      %c0_89 = arith.constant 0 : index
      %c0_90 = arith.constant 0 : index
      %174 = vector.load %arg19[%c0_89, %c0_90] : memref<16x256xbf16, #tpu.memory_space<vmem>>, vector<16x256xbf16>
      tpu.vector_store %arg19[%c0_89, %c0_90], %173 {strides = array<i32>} : memref<16x256xbf16, #tpu.memory_space<vmem>>, vector<16x256xbf16>,
    } else {
    }
    %c0 = arith.constant 0 : index
    %c0_1 = arith.constant 0 : index
    %3 = vector.load %arg3[%c0, %c0_1] : memref<2x128xf32, #tpu.memory_space<vmem>>, vector<2x128xf32>
    %4 = arith.truncf %3 : vector<2x128xf32> to vector<2x128xbf16>
    %c0_2 = arith.constant 0 : index
    %c0_3 = arith.constant 0 : index
    %5 = vector.load %arg7[%c0_2, %c0_3] : memref<128x128xbf16, #tpu.memory_space<vmem>>, vector<128x128xbf16>
    %cst = arith.constant dense<0.000000e+00> : vector<2x128xf32>
    %6 = tpu.matmul %4, %5, %cst {dimension_numbers = #tpu.dot_dimension_numbers<[1], [0], [0], [1], [0, 0, 1, 1], [], []>} : vector<2x128xbf16>, vector<128x128xbf16>, vector<2x128xf32> -> vector<2x128xf32>
    %c0_4 = arith.constant 0 : index
    %c0_5 = arith.constant 0 : index
    %7 = vector.load %arg8[%c0_4, %c0_5] : memref<1x128xf32, #tpu.memory_space<vmem>>, vector<1x128xf32>
    %8 = vector.broadcast %7 : vector<1x128xf32> to vector<2x128xf32>
    %9 = arith.addf %6, %8 : vector<2x128xf32>
    %10 = arith.negf %9 : vector<2x128xf32>
    %11 = math.exp %10 : vector<2x128xf32>
    %cst_6 = arith.constant 1.000000e+00 : f32
    %12 = vector.broadcast %cst_6 : f32 to vector<2x128xf32>
    %13 = arith.addf %12, %11 : vector<2x128xf32>
    %14 = arith.divf %12, %13 : vector<2x128xf32>
    %15 = arith.mulf %9, %14 : vector<2x128xf32>
    %16 = arith.truncf %15 : vector<2x128xf32> to vector<2x128xbf16>
    %c0_7 = arith.constant 0 : index
    %c0_8 = arith.constant 0 : index
    %17 = vector.load %arg9[%c0_7, %c0_8] : memref<128x128xbf16, #tpu.memory_space<vmem>>, vector<128x128xbf16>
    %cst_9 = arith.constant dense<0.000000e+00> : vector<2x128xf32>
    %18 = tpu.matmul %16, %17, %cst_9 {dimension_numbers = #tpu.dot_dimension_numbers<[1], [0], [0], [1], [0, 0, 1, 1], [], []>} : vector<2x128xbf16>, vector<128x128xbf16>, vector<2x128xf32> -> vector<2x128xf32>
    %c0_10 = arith.constant 0 : index
    %c0_11 = arith.constant 0 : index
    %19 = vector.load %arg10[%c0_10, %c0_11] : memref<1x128xf32, #tpu.memory_space<vmem>>, vector<1x128xf32>
    %20 = vector.broadcast %19 : vector<1x128xf32> to vector<2x128xf32>
    %21 = arith.addf %18, %20 : vector<2x128xf32>
    %22 = tpu.iota {dimensions = array<i32: 0>} : vector<2x128xi32>
    %23 = vector.broadcast %arg0 : i32 to vector<2x128xi32>
    %24 = arith.cmpi eq, %22, %23 : vector<2x128xi32>
    %cst_12 = arith.constant 0.000000e+00 : f32
    %25 = vector.broadcast %cst_12 : f32 to vector<2x128xf32>
    %26 = arith.select %24, %21, %25 : vector<2x128xi1>, vector<2x128xf32>
    %cst_13 = arith.constant dense<0.000000e+00> : vector<128xf32>
    %27 = vector.multi_reduction <add>, %26, %cst_13 [0] : vector<2x128xf32> to vector<128xf32>
    %28 = vector.shape_cast %27 : vector<128xf32> to vector<1x128xf32>
    %c0_14 = arith.constant 0 : index
    %c0_15 = arith.constant 0 : index
    %29 = vector.load %arg18[%c0_14, %c0_15] : memref<48x128xf32, #tpu.memory_space<vmem>>, vector<48x128xf32>
    %30 = arith.truncf %29 : vector<48x128xf32> to vector<48x128xbf16>
    %c0_16 = arith.constant 0 : index
    %c0_17 = arith.constant 0 : index
    %c0_18 = arith.constant 0 : index
    %31 = vector.load %arg13[%c0_16, %c0_17, %c0_18] : memref<6x128x128xbf16, #tpu.memory_space<vmem>>, vector<1x128x128xbf16>
    %32 = vector.shape_cast %31 : vector<1x128x128xbf16> to vector<128x128xbf16>
    %cst_19 = arith.constant dense<0.000000e+00> : vector<48x128xf32>
    %33 = tpu.matmul %30, %32, %cst_19 {dimension_numbers = #tpu.dot_dimension_numbers<[1], [0], [0], [1], [0, 0, 1, 1], [], []>} : vector<48x128xbf16>, vector<128x128xbf16>, vector<48x128xf32> -> vector<48x128xf32>
    %c0_20 = arith.constant 0 : index
    %c0_21 = arith.constant 0 : index
    %34 = vector.load %arg14[%c0_20, %c0_21] : memref<6x128xf32, #tpu.memory_space<vmem>>, vector<1x128xf32>
    %35 = vector.shape_cast %34 : vector<1x128xf32> to vector<128xf32>
    %36 = vector.shape_cast %35 : vector<128xf32> to vector<1x128xf32>
    %37 = vector.broadcast %36 : vector<1x128xf32> to vector<48x128xf32>
    %38 = arith.addf %33, %37 : vector<48x128xf32>
    %39 = vector.broadcast %28 : vector<1x128xf32> to vector<48x128xf32>
    %40 = arith.addf %38, %39 : vector<48x128xf32>
    %41 = arith.truncf %40 : vector<48x128xf32> to vector<48x128xbf16>
    %c1 = arith.constant 1 : index
    %c0_22 = arith.constant 0 : index
    %c0_23 = arith.constant 0 : index
    %42 = vector.load %arg13[%c1, %c0_22, %c0_23] : memref<6x128x128xbf16, #tpu.memory_space<vmem>>, vector<1x128x128xbf16>
    %43 = vector.shape_cast %42 : vector<1x128x128xbf16> to vector<128x128xbf16>
    %cst_24 = arith.constant dense<0.000000e+00> : vector<48x128xf32>
    %44 = tpu.matmul %41, %43, %cst_24 {dimension_numbers = #tpu.dot_dimension_numbers<[1], [0], [0], [1], [0, 0, 1, 1], [], []>} : vector<48x128xbf16>, vector<128x128xbf16>, vector<48x128xf32> -> vector<48x128xf32>
    %c1_25 = arith.constant 1 : index
    %c0_26 = arith.constant 0 : index
    %45 = vector.load %arg14[%c1_25, %c0_26] : memref<6x128xf32, #tpu.memory_space<vmem>>, vector<1x128xf32>
    %46 = vector.shape_cast %45 : vector<1x128xf32> to vector<128xf32>
    %47 = vector.shape_cast %46 : vector<128xf32> to vector<1x128xf32>
    %48 = vector.broadcast %47 : vector<1x128xf32> to vector<48x128xf32>
    %49 = arith.addf %44, %48 : vector<48x128xf32>
    %50 = arith.truncf %49 : vector<48x128xf32> to vector<48x128xbf16>
    %c0_27 = arith.constant 0 : index
    %c0_28 = arith.constant 0 : index
    %51 = vector.load %arg19[%c0_27, %c0_28] : memref<16x256xbf16, #tpu.memory_space<vmem>>, vector<16x256xbf16>
    %52 = vector.extract_strided_slice %51 {offsets = [0, 0], sizes = [16, 128], strides = [1, 1]} : vector<16x256xbf16> to vector<16x128xbf16>
    %53 = vector.extract_strided_slice %51 {offsets = [0, 128], sizes = [16, 128], strides = [1, 1]} : vector<16x256xbf16> to vector<16x128xbf16>
    "tpu.trace_start"() <{level = 10 : i32, message = "ld,sd->ls"}> : () -> ()
    %cst_29 = arith.constant dense<0.000000e+00> : vector<48x16xf32>
    %54 = tpu.matmul %50, %52, %cst_29 {dimension_numbers = #tpu.dot_dimension_numbers<[1], [1], [0], [0], [0, 0, 1, 0], [], []>} : vector<48x128xbf16>, vector<16x128xbf16>, vector<48x16xf32> -> vector<48x16xf32>
    "tpu.trace_stop"() : () -> ()
    %cst_30 = arith.constant 0.0883883461 : f32
    %55 = vector.broadcast %cst_30 : f32 to vector<48x16xf32>
    %56 = arith.mulf %54, %55 : vector<48x16xf32>
    %57 = vector.extract_strided_slice %56 {offsets = [0, 0], sizes = [48, 8], strides = [1, 1]} : vector<48x16xf32> to vector<48x8xf32>
    %cst_31 = arith.constant dense<0xFF800000> : vector<48xf32>
    %58 = vector.multi_reduction <maximumf>, %57, %cst_31 [1] : vector<48x8xf32> to vector<48xf32>
    %59 = vector.shape_cast %58 : vector<48xf32> to vector<48x1xf32>
    %60 = vector.broadcast %59 : vector<48x1xf32> to vector<48x8xf32>
    %61 = arith.subf %57, %60 : vector<48x8xf32>
    %62 = math.exp %61 : vector<48x8xf32>
    %cst_32 = arith.constant dense<0.000000e+00> : vector<48xf32>
    %63 = vector.multi_reduction <add>, %62, %cst_32 [1] : vector<48x8xf32> to vector<48xf32>
    %64 = vector.shape_cast %63 : vector<48xf32> to vector<48x1xf32>
    %65 = tpu.reciprocal %64 {approx = true} : vector<48x1xf32> -> vector<48x1xf32>
    %66 = vector.broadcast %65 : vector<48x1xf32> to vector<48x8xf32>
    %67 = arith.mulf %62, %66 : vector<48x8xf32>
    %68 = arith.truncf %67 : vector<48x8xf32> to vector<48x8xbf16>
    %69 = vector.extract_strided_slice %53 {offsets = [0, 0], sizes = [8, 128], strides = [1, 1]} : vector<16x128xbf16> to vector<8x128xbf16>
    "tpu.trace_start"() <{level = 10 : i32, message = "ls,sd->ld"}> : () -> ()
    %cst_33 = arith.constant dense<0.000000e+00> : vector<48x128xf32>
    %70 = tpu.matmul %68, %69, %cst_33 {dimension_numbers = #tpu.dot_dimension_numbers<[1], [0], [0], [1], [0, 0, 1, 1], [], []>} : vector<48x8xbf16>, vector<8x128xbf16>, vector<48x128xf32> -> vector<48x128xf32>
    "tpu.trace_stop"() : () -> ()
    %71 = vector.extract_strided_slice %56 {offsets = [0, 8], sizes = [48, 8], strides = [1, 1]} : vector<48x16xf32> to vector<48x8xf32>
    %cst_34 = arith.constant dense<0xFF800000> : vector<48xf32>
    %72 = vector.multi_reduction <maximumf>, %71, %cst_34 [1] : vector<48x8xf32> to vector<48xf32>
    %73 = vector.shape_cast %72 : vector<48xf32> to vector<48x1xf32>
    %74 = vector.broadcast %73 : vector<48x1xf32> to vector<48x8xf32>
    %75 = arith.subf %71, %74 : vector<48x8xf32>
    %76 = math.exp %75 : vector<48x8xf32>
    %cst_35 = arith.constant dense<0.000000e+00> : vector<48xf32>
    %77 = vector.multi_reduction <add>, %76, %cst_35 [1] : vector<48x8xf32> to vector<48xf32>
    %78 = vector.shape_cast %77 : vector<48xf32> to vector<48x1xf32>
    %79 = tpu.reciprocal %78 {approx = true} : vector<48x1xf32> -> vector<48x1xf32>
    %80 = vector.broadcast %79 : vector<48x1xf32> to vector<48x8xf32>
    %81 = arith.mulf %76, %80 : vector<48x8xf32>
    %82 = arith.truncf %81 : vector<48x8xf32> to vector<48x8xbf16>
    %83 = vector.extract_strided_slice %53 {offsets = [8, 0], sizes = [8, 128], strides = [1, 1]} : vector<16x128xbf16> to vector<8x128xbf16>
    "tpu.trace_start"() <{level = 10 : i32, message = "ls,sd->ld"}> : () -> ()
    %cst_36 = arith.constant dense<0.000000e+00> : vector<48x128xf32>
    %84 = tpu.matmul %82, %83, %cst_36 {dimension_numbers = #tpu.dot_dimension_numbers<[1], [0], [0], [1], [0, 0, 1, 1], [], []>} : vector<48x8xbf16>, vector<8x128xbf16>, vector<48x128xf32> -> vector<48x128xf32>
    "tpu.trace_stop"() : () -> ()
    %85 = tpu.concatenate %70, %84 in 0 : vector<48x128xf32>, vector<48x128xf32> -> vector<96x128xf32>
    %86 = tpu.concatenate %40, %40 in 0 : vector<48x128xf32>, vector<48x128xf32> -> vector<96x128xf32>
    %87 = arith.truncf %85 : vector<96x128xf32> to vector<96x128xbf16>
    %c2 = arith.constant 2 : index
    %c0_37 = arith.constant 0 : index
    %c0_38 = arith.constant 0 : index
    %88 = vector.load %arg13[%c2, %c0_37, %c0_38] : memref<6x128x128xbf16, #tpu.memory_space<vmem>>, vector<1x128x128xbf16>
    %89 = vector.shape_cast %88 : vector<1x128x128xbf16> to vector<128x128xbf16>
    %cst_39 = arith.constant dense<0.000000e+00> : vector<96x128xf32>
    %90 = tpu.matmul %87, %89, %cst_39 {dimension_numbers = #tpu.dot_dimension_numbers<[1], [0], [0], [1], [0, 0, 1, 1], [], []>} : vector<96x128xbf16>, vector<128x128xbf16>, vector<96x128xf32> -> vector<96x128xf32>
    %c2_40 = arith.constant 2 : index
    %c0_41 = arith.constant 0 : index
    %91 = vector.load %arg14[%c2_40, %c0_41] : memref<6x128xf32, #tpu.memory_space<vmem>>, vector<1x128xf32>
    %92 = vector.shape_cast %91 : vector<1x128xf32> to vector<128xf32>
    %93 = vector.shape_cast %92 : vector<128xf32> to vector<1x128xf32>
    %94 = vector.broadcast %93 : vector<1x128xf32> to vector<96x128xf32>
    %95 = arith.addf %90, %94 : vector<96x128xf32>
    %96 = arith.addf %86, %95 : vector<96x128xf32>
    %97 = arith.truncf %96 : vector<96x128xf32> to vector<96x128xbf16>
    %c3 = arith.constant 3 : index
    %c0_42 = arith.constant 0 : index
    %c0_43 = arith.constant 0 : index
    %98 = vector.load %arg13[%c3, %c0_42, %c0_43] : memref<6x128x128xbf16, #tpu.memory_space<vmem>>, vector<1x128x128xbf16>
    %99 = vector.shape_cast %98 : vector<1x128x128xbf16> to vector<128x128xbf16>
    %cst_44 = arith.constant dense<0.000000e+00> : vector<96x128xf32>
    %100 = tpu.matmul %97, %99, %cst_44 {dimension_numbers = #tpu.dot_dimension_numbers<[1], [0], [0], [1], [0, 0, 1, 1], [], []>} : vector<96x128xbf16>, vector<128x128xbf16>, vector<96x128xf32> -> vector<96x128xf32>
    %c3_45 = arith.constant 3 : index
    %c0_46 = arith.constant 0 : index
    %101 = vector.load %arg14[%c3_45, %c0_46] : memref<6x128xf32, #tpu.memory_space<vmem>>, vector<1x128xf32>
    %102 = vector.shape_cast %101 : vector<1x128xf32> to vector<128xf32>
    %103 = vector.shape_cast %102 : vector<128xf32> to vector<1x128xf32>
    %104 = vector.broadcast %103 : vector<1x128xf32> to vector<96x128xf32>
    %105 = arith.addf %100, %104 : vector<96x128xf32>
    %106 = arith.negf %105 : vector<96x128xf32>
    %107 = math.exp %106 : vector<96x128xf32>
    %cst_47 = arith.constant 1.000000e+00 : f32
    %108 = vector.broadcast %cst_47 : f32 to vector<96x128xf32>
    %109 = arith.addf %108, %107 : vector<96x128xf32>
    %110 = arith.divf %108, %109 : vector<96x128xf32>
    %111 = arith.mulf %105, %110 : vector<96x128xf32>
    %112 = arith.truncf %111 : vector<96x128xf32> to vector<96x128xbf16>
    %c4 = arith.constant 4 : index
    %c0_48 = arith.constant 0 : index
    %c0_49 = arith.constant 0 : index
    %113 = vector.load %arg13[%c4, %c0_48, %c0_49] : memref<6x128x128xbf16, #tpu.memory_space<vmem>>, vector<1x128x128xbf16>
    %114 = vector.shape_cast %113 : vector<1x128x128xbf16> to vector<128x128xbf16>
    %cst_50 = arith.constant dense<0.000000e+00> : vector<96x128xf32>
    %115 = tpu.matmul %112, %114, %cst_50 {dimension_numbers = #tpu.dot_dimension_numbers<[1], [0], [0], [1], [0, 0, 1, 1], [], []>} : vector<96x128xbf16>, vector<128x128xbf16>, vector<96x128xf32> -> vector<96x128xf32>
    %c4_51 = arith.constant 4 : index
    %c0_52 = arith.constant 0 : index
    %116 = vector.load %arg14[%c4_51, %c0_52] : memref<6x128xf32, #tpu.memory_space<vmem>>, vector<1x128xf32>
    %117 = vector.shape_cast %116 : vector<1x128xf32> to vector<128xf32>
    %118 = vector.shape_cast %117 : vector<128xf32> to vector<1x128xf32>
    %119 = vector.broadcast %118 : vector<1x128xf32> to vector<96x128xf32>
    %120 = arith.addf %115, %119 : vector<96x128xf32>
    %121 = arith.addf %96, %120 : vector<96x128xf32>
    %122 = arith.truncf %121 : vector<96x128xf32> to vector<96x128xbf16>
    %c5 = arith.constant 5 : index
    %c0_53 = arith.constant 0 : index
    %c0_54 = arith.constant 0 : index
    %123 = vector.load %arg13[%c5, %c0_53, %c0_54] : memref<6x128x128xbf16, #tpu.memory_space<vmem>>, vector<1x128x128xbf16>
    %124 = vector.shape_cast %123 : vector<1x128x128xbf16> to vector<128x128xbf16>
    %cst_55 = arith.constant dense<0.000000e+00> : vector<96x128xf32>
    %125 = tpu.matmul %122, %124, %cst_55 {dimension_numbers = #tpu.dot_dimension_numbers<[1], [0], [0], [1], [0, 0, 1, 1], [], []>} : vector<96x128xbf16>, vector<128x128xbf16>, vector<96x128xf32> -> vector<96x128xf32>
    %c5_56 = arith.constant 5 : index
    %c0_57 = arith.constant 0 : index
    %126 = vector.load %arg14[%c5_56, %c0_57] : memref<6x128xf32, #tpu.memory_space<vmem>>, vector<1x128xf32>
    %127 = vector.shape_cast %126 : vector<1x128xf32> to vector<128xf32>
    %128 = vector.shape_cast %127 : vector<128xf32> to vector<1x128xf32>
    %129 = vector.broadcast %128 : vector<1x128xf32> to vector<96x128xf32>
    %130 = arith.addf %125, %129 : vector<96x128xf32>
    %131 = vector.extract_strided_slice %130 {offsets = [0, 0], sizes = [48, 128], strides = [1, 1]} : vector<96x128xf32> to vector<48x128xf32>
    %132 = vector.extract_strided_slice %130 {offsets = [48, 0], sizes = [48, 128], strides = [1, 1]} : vector<96x128xf32> to vector<48x128xf32>
    %133 = arith.subf %132, %131 : vector<48x128xf32>
    %cst_58 = arith.constant 7.500000e+00 : f32
    %134 = vector.broadcast %cst_58 : f32 to vector<48x128xf32>
    %135 = arith.mulf %134, %133 : vector<48x128xf32>
    %136 = arith.addf %131, %135 : vector<48x128xf32>
    %c1_i32 = arith.constant 1 : i32
    %137 = arith.cmpi eq, %arg0, %c1_i32 : i32
    %cst_59 = arith.constant 1.00042522 : f32
    %cst_60 = arith.constant 1.15137923 : f32
    %138 = arith.select %137, %cst_59, %cst_60 : f32
    %c1_i32_61 = arith.constant 1 : i32
    %139 = arith.cmpi eq, %arg0, %c1_i32_61 : i32
    %cst_62 = arith.constant -0.0291671585 : f32
    %cst_63 = arith.constant -0.542268097 : f32
    %140 = arith.select %139, %cst_62, %cst_63 : f32
    %141 = vector.broadcast %138 : f32 to vector<48x128xf32>
    %142 = arith.mulf %141, %29 : vector<48x128xf32>
    %143 = vector.broadcast %140 : f32 to vector<48x128xf32>
    %144 = arith.mulf %143, %136 : vector<48x128xf32>
    %145 = arith.addf %142, %144 : vector<48x128xf32>
    %c0_64 = arith.constant 0 : index
    %c0_65 = arith.constant 0 : index
    %146 = vector.load %arg18[%c0_64, %c0_65] : memref<48x128xf32, #tpu.memory_space<vmem>>, vector<48x128xf32>
    tpu.vector_store %arg18[%c0_64, %c0_65], %145 {strides = array<i32>} : memref<48x128xf32, #tpu.memory_space<vmem>>, vector<48x128xf32>,
    %c1_i32_66 = arith.constant 1 : i32
    %147 = arith.cmpi eq, %arg0, %c1_i32_66 : i32
    %148 = arith.extui %147 : i1 to i32
    %c0_i32_67 = arith.constant 0 : i32
    %149 = arith.cmpi ne, %148, %c0_i32_67 : i32
    scf.if %149 {
      %cst_68 = arith.constant 5.4899807 : f32
      %150 = vector.broadcast %cst_68 : f32 to vector<48x128xf32>
      %151 = arith.mulf %145, %150 : vector<48x128xf32>
      %152 = arith.truncf %151 : vector<48x128xf32> to vector<48x128xbf16>
      %c0_69 = arith.constant 0 : index
      %c0_70 = arith.constant 0 : index
      %153 = vector.load %arg15[%c0_69, %c0_70] : memref<128x128xbf16, #tpu.memory_space<vmem>>, vector<128x128xbf16>
      %cst_71 = arith.constant dense<0.000000e+00> : vector<48x128xf32>
      %154 = tpu.matmul %152, %153, %cst_71 {dimension_numbers = #tpu.dot_dimension_numbers<[1], [0], [0], [1], [0, 0, 1, 1], [], []>} : vector<48x128xbf16>, vector<128x128xbf16>, vector<48x128xf32> -> vector<48x128xf32>
      %c0_72 = arith.constant 0 : index
      %c0_73 = arith.constant 0 : index
      %155 = vector.load %arg16[%c0_72, %c0_73] : memref<1x128xf32, #tpu.memory_space<vmem>>, vector<1x128xf32>
      %156 = vector.broadcast %155 : vector<1x128xf32> to vector<48x128xf32>
      %157 = arith.addf %154, %156 : vector<48x128xf32>
      %158 = math.tanh %157 : vector<48x128xf32>
      %c0_74 = arith.constant 0 : index
      %c0_75 = arith.constant 0 : index
      %159 = vector.load %arg17[%c0_74, %c0_75] : memref<48x128xf32, #tpu.memory_space<vmem>>, vector<48x128xf32>
      tpu.vector_store %arg17[%c0_74, %c0_75], %158 {strides = array<i32>} : memref<48x128xf32, #tpu.memory_space<vmem>>, vector<48x128xf32>,
    } else {
    }
    return
  }
  func.func @transform_0(%arg0: i32) -> (i32, i32) {
    %c0_i32 = arith.constant 0 : i32
    %c0_i32_0 = arith.constant 0 : i32
    %c0_i32_1 = arith.constant 0 : i32
    return %c0_i32, %c0_i32_0 : i32, i32
  }
  func.func @transform_1(%arg0: i32) -> (i32, i32) {
    %c0_i32 = arith.constant 0 : i32
    %c0_i32_0 = arith.constant 0 : i32
    %c0_i32_1 = arith.constant 0 : i32
    return %c0_i32, %c0_i32_0 : i32, i32
  }
  func.func @transform_2(%arg0: i32) -> (i32, i32) {
    %c0_i32 = arith.constant 0 : i32
    %c0_i32_0 = arith.constant 0 : i32
    %c0_i32_1 = arith.constant 0 : i32
    return %c0_i32, %c0_i32_0 : i32, i32
  }
  func.func @transform_3(%arg0: i32) -> (i32, i32) {
    %c0_i32 = arith.constant 0 : i32
    %c0_i32_0 = arith.constant 0 : i32
    %c0_i32_1 = arith.constant 0 : i32
    return %c0_i32, %c0_i32_0 : i32, i32
  }
  func.func @transform_4(%arg0: i32) -> (i32, i32) {
    %c0_i32 = arith.constant 0 : i32
    %c0_i32_0 = arith.constant 0 : i32
    %c0_i32_1 = arith.constant 0 : i32
    return %c0_i32, %c0_i32_0 : i32, i32
  }
  func.func @transform_5(%arg0: i32) -> (i32, i32) {
    %c0_i32 = arith.constant 0 : i32
    %c0_i32_0 = arith.constant 0 : i32
    %c0_i32_1 = arith.constant 0 : i32
    return %c0_i32, %c0_i32_0 : i32, i32
  }
  func.func @transform_6(%arg0: i32) -> (i32, i32) {
    %c0_i32 = arith.constant 0 : i32
    %c0_i32_0 = arith.constant 0 : i32
    %c0_i32_1 = arith.constant 0 : i32
    return %c0_i32, %c0_i32_0 : i32, i32
  }
  func.func @transform_7(%arg0: i32) -> (i32, i32) {
    %c0_i32 = arith.constant 0 : i32
    %c0_i32_0 = arith.constant 0 : i32
    %c0_i32_1 = arith.constant 0 : i32
    return %c0_i32, %c0_i32_0 : i32, i32
  }
  func.func @transform_8(%arg0: i32) -> (i32, i32) {
    %c0_i32 = arith.constant 0 : i32
    %c0_i32_0 = arith.constant 0 : i32
    %c0_i32_1 = arith.constant 0 : i32
    return %c0_i32, %c0_i32_0 : i32, i32
  }
  func.func @transform_9(%arg0: i32) -> (i32, i32) {
    %c0_i32 = arith.constant 0 : i32
    %c0_i32_0 = arith.constant 0 : i32
    %c0_i32_1 = arith.constant 0 : i32
    return %c0_i32, %c0_i32_0 : i32, i32
  }
  func.func @transform_10(%arg0: i32) -> (i32, i32) {
    %c0_i32 = arith.constant 0 : i32
    %c0_i32_0 = arith.constant 0 : i32
    %c0_i32_1 = arith.constant 0 : i32
    return %c0_i32, %c0_i32_0 : i32, i32
  }
  func.func @transform_11(%arg0: i32) -> (i32, i32) {
    %c0_i32 = arith.constant 0 : i32
    %c0_i32_0 = arith.constant 0 : i32
    %c0_i32_1 = arith.constant 0 : i32
    return %c0_i32, %c0_i32_0 : i32, i32
  }
  func.func @transform_12(%arg0: i32) -> (i32, i32, i32) {
    %c0_i32 = arith.constant 0 : i32
    %c0_i32_0 = arith.constant 0 : i32
    %c0_i32_1 = arith.constant 0 : i32
    %c0_i32_2 = arith.constant 0 : i32
    return %c0_i32, %c0_i32_0, %c0_i32_1 : i32, i32, i32
  }
  func.func @transform_13(%arg0: i32) -> (i32, i32) {
    %c0_i32 = arith.constant 0 : i32
    %c0_i32_0 = arith.constant 0 : i32
    %c0_i32_1 = arith.constant 0 : i32
    return %c0_i32, %c0_i32_0 : i32, i32
  }
  func.func @transform_14(%arg0: i32) -> (i32, i32) {
    %c0_i32 = arith.constant 0 : i32
    %c0_i32_0 = arith.constant 0 : i32
    %c0_i32_1 = arith.constant 0 : i32
    return %c0_i32, %c0_i32_0 : i32, i32
  }
  func.func @transform_15(%arg0: i32) -> (i32, i32) {
    %c0_i32 = arith.constant 0 : i32
    %c0_i32_0 = arith.constant 0 : i32
    %c0_i32_1 = arith.constant 0 : i32
    return %c0_i32, %c0_i32_0 : i32, i32
  }
  func.func @transform_16(%arg0: i32) -> (i32, i32) {
    %c0_i32 = arith.constant 0 : i32
    %c0_i32_0 = arith.constant 0 : i32
    %c0_i32_1 = arith.constant 0 : i32
    return %c0_i32, %c0_i32_0 : i32, i32
  }
}

</mosaic_0001>

<llo_original>
// kernel: prompt_model_forward.1
$region0: #{prompt_model_forward.1}
  #allocation0 [shape = 'u32[]', space=smem, size = 0x4, offset = 0x4, fixed_abs, tag = 'smem constant byte address 0x4 - core index']
  #allocation1 [shape = 'u32[72,128]{1,0:T(1,128)}', space=vmem, size = 0x9000, scoped, tag = 'internal scratch']
  #allocation2 [shape = 'f32[48,128]{1,0:T(8,128)}', space=vmem, size = 0x6000, scoped, tag = 'scratch operand']
  #allocation3 [shape = 'bf16[16,256]{1,0:T(8,128)(2,1)}', space=vmem, size = 0x2000, scoped, tag = 'scratch operand']
  %s0 = inlined_call_operand.vmem [shape: f32[48,128], index: 0, kind: input, shape index: {}]
  %s1 = inlined_call_operand.vmem [shape: f32[48,128], index: 1, kind: input, shape index: {}]
  %s2 = inlined_call_operand.vmem [shape: f32[2,128], index: 2, kind: input, shape index: {}]
  %s3 = inlined_call_operand.vmem [shape: f32[16,128], index: 3, kind: input, shape index: {}]
  %s4 = inlined_call_operand.vmem [shape: bf16[128,128], index: 4, kind: input, shape index: {}]
  %s5 = inlined_call_operand.vmem [shape: f32[1,128], index: 5, kind: input, shape index: {}]
  %s6 = inlined_call_operand.vmem [shape: bf16[128,128], index: 6, kind: input, shape index: {}]
  %s7 = inlined_call_operand.vmem [shape: f32[1,128], index: 7, kind: input, shape index: {}]
  %s8 = inlined_call_operand.vmem [shape: bf16[128,128], index: 8, kind: input, shape index: {}]
  %s9 = inlined_call_operand.vmem [shape: f32[1,128], index: 9, kind: input, shape index: {}]
  %s10 = inlined_call_operand.vmem [shape: bf16[128,256], index: 10, kind: input, shape index: {}]
  %s11 = inlined_call_operand.vmem [shape: f32[1,256], index: 11, kind: input, shape index: {}]
  %s12 = inlined_call_operand.vmem [shape: bf16[6,128,128], index: 12, kind: input, shape index: {}]
  %s13 = inlined_call_operand.vmem [shape: f32[6,128], index: 13, kind: input, shape index: {}]
  %s14 = inlined_call_operand.vmem [shape: bf16[128,128], index: 14, kind: input, shape index: {}]
  %s15 = inlined_call_operand.vmem [shape: f32[1,128], index: 15, kind: input, shape index: {}]
  %s16 = inlined_call_operand.vmem [shape: f32[48,128], index: 16, kind: output, shape index: {}]
  %s17 = sld [smem:[#allocation0]]
  $region105: #{prompt_model_forward.1} parent=0
    _
  %s19 = ssub.s32 1, %s17
  %s20 = scalar_select 0, %s19, %s17
  loop: start=0, step=1, limit=4
  $region2: #{prompt_model_forward.1} parent=0 // loop_pre_header
    _
  $region3: #{prompt_model_forward.1} parent=0 // loop_header
    %s22 = sphi 0, %s26
    %p23 = scmp.ge.s32.totalorder %s22, 4
    %s30 = sphi 0, %s30
    %s32 = sphi 0, %s30
    %s33 = sphi 0, %s32
    %s47 = sphi 0, %s33
    %s51 = sphi 0, %s51
    %s53 = sphi 0, %s51
    %s54 = sphi 0, %s53
    %s68 = sphi 0, %s54
    %s72 = sphi 0, %s72
    %s74 = sphi 0, %s72
    %s75 = sphi 0, %s74
    %s89 = sphi 0, %s75
    %s93 = sphi 0, %s93
    %s95 = sphi 0, %s93
    %s96 = sphi 0, %s95
    %s110 = sphi 0, %s96
    %s114 = sphi 0, %s114
    %s116 = sphi 0, %s114
    %s117 = sphi 0, %s116
    %s131 = sphi 0, %s117
    %s135 = sphi 0, %s135
    %s137 = sphi 0, %s135
    %s138 = sphi 0, %s137
    %s152 = sphi 0, %s138
    %s156 = sphi 0, %s156
    %s158 = sphi 0, %s156
    %s159 = sphi 0, %s158
    %s173 = sphi 0, %s159
    %s177 = sphi 0, %s177
    %s179 = sphi 0, %s177
    %s180 = sphi 0, %s179
    %s194 = sphi 0, %s180
    %s198 = sphi 0, %s198
    %s200 = sphi 0, %s198
    %s201 = sphi 0, %s200
    %s215 = sphi 0, %s201
    %s219 = sphi 0, %s219
    %s221 = sphi 0, %s219
    %s222 = sphi 0, %s221
    %s236 = sphi 0, %s222
    %s240 = sphi 0, %s240
    %s242 = sphi 0, %s240
    %s243 = sphi 0, %s242
    %s257 = sphi 0, %s243
    %s261 = sphi 0, %s261
    %s263 = sphi 0, %s261
    %s264 = sphi 0, %s263
    %s278 = sphi 0, %s264
    %s282 = sphi 0, %s282
    %s284 = sphi 0, %s282
    %s285 = sphi 0, %s284
    %s299 = sphi 0, %s285
    %s303 = sphi 0, %s303
    %s305 = sphi 0, %s303
    %s306 = sphi 0, %s305
    %s320 = sphi 0, %s306
    %s324 = sphi 0, %s324
    %s326 = sphi 0, %s324
    %s327 = sphi 0, %s326
    %s341 = sphi 0, %s327
    %s345 = sphi 0, %s345
    %s347 = sphi 0, %s345
    %s348 = sphi 0, %s347
    %s362 = sphi 0, %s348
    %s366 = sphi 0, %s366
    %s368 = sphi 0, %s366
    %s369 = sphi 0, %s368
    %s383 = sphi 0, %s369
  $region4: #{prompt_model_forward.1} parent=0 // loop_header_branch
    %25 = sbr.rel (%p23) target = $region8
  $region5: #{prompt_model_forward.1} parent=0 // loop_body
    %s27 = ssub.s32 %s22, 1
    %s28 = ssub.s32 %s22, 2
    %s29 = sadd.s32 %s22, 1
    %s31 = sadd.s32 %s30, 1
    %p34 = scmp.eq.s32.totalorder %s22, 1
    %p35 = scmp.ne.s32.totalorder %s30, %s32
    %p36 = scmp.eq.s32.totalorder %s22, 0
    %p37 = por %p35, %p36
    %p38 = scmp.ne.s32.totalorder %s30, %s32
    %p39 = scmp.eq.s32.totalorder %s27, 1
    %p40 = por %p38, %p39
    %p41 = scmp.ne.s32.totalorder %s32, %s33
    %p42 = scmp.eq.s32.totalorder %s27, 0
    %p43 = por %p41, %p42
    %p44 = scmp.ne.s32.totalorder %s32, %s33
    %p45 = scmp.eq.s32.totalorder %s28, 1
    %p46 = por %p44, %p45
    %p48 = scmp.ne.s32.totalorder %s33, %s47
    %p49 = scmp.eq.s32.totalorder %s28, 0
    %p50 = por %p48, %p49
    %s52 = sadd.s32 %s51, 1
    %p55 = scmp.eq.s32.totalorder %s22, 1
    %p56 = scmp.ne.s32.totalorder %s51, %s53
    %p57 = scmp.eq.s32.totalorder %s22, 0
    %p58 = por %p56, %p57
    %p59 = scmp.ne.s32.totalorder %s51, %s53
    %p60 = scmp.eq.s32.totalorder %s27, 1
    %p61 = por %p59, %p60
    %p62 = scmp.ne.s32.totalorder %s53, %s54
    %p63 = scmp.eq.s32.totalorder %s27, 0
    %p64 = por %p62, %p63
    %p65 = scmp.ne.s32.totalorder %s53, %s54
    %p66 = scmp.eq.s32.totalorder %s28, 1
    %p67 = por %p65, %p66
    %p69 = scmp.ne.s32.totalorder %s54, %s68
    %p70 = scmp.eq.s32.totalorder %s28, 0
    %p71 = por %p69, %p70
    %s73 = sadd.s32 %s72, 1
    %p76 = scmp.eq.s32.totalorder %s22, 1
    %p77 = scmp.ne.s32.totalorder %s72, %s74
    %p78 = scmp.eq.s32.totalorder %s22, 0
    %p79 = por %p77, %p78
    %p80 = scmp.ne.s32.totalorder %s72, %s74
    %p81 = scmp.eq.s32.totalorder %s27, 1
    %p82 = por %p80, %p81
    %p83 = scmp.ne.s32.totalorder %s74, %s75
    %p84 = scmp.eq.s32.totalorder %s27, 0
    %p85 = por %p83, %p84
    %p86 = scmp.ne.s32.totalorder %s74, %s75
    %p87 = scmp.eq.s32.totalorder %s28, 1
    %p88 = por %p86, %p87
    %p90 = scmp.ne.s32.totalorder %s75, %s89
    %p91 = scmp.eq.s32.totalorder %s28, 0
    %p92 = por %p90, %p91
    %s94 = sadd.s32 %s93, 1
    %p97 = scmp.eq.s32.totalorder %s22, 1
    %p98 = scmp.ne.s32.totalorder %s93, %s95
    %p99 = scmp.eq.s32.totalorder %s22, 0
    %p100 = por %p98, %p99
    %p101 = scmp.ne.s32.totalorder %s93, %s95
    %p102 = scmp.eq.s32.totalorder %s27, 1
    %p103 = por %p101, %p102
    %p104 = scmp.ne.s32.totalorder %s95, %s96
    %p105 = scmp.eq.s32.totalorder %s27, 0
    %p106 = por %p104, %p105
    %p107 = scmp.ne.s32.totalorder %s95, %s96
    %p108 = scmp.eq.s32.totalorder %s28, 1
    %p109 = por %p107, %p108
    %p111 = scmp.ne.s32.totalorder %s96, %s110
    %p112 = scmp.eq.s32.totalorder %s28, 0
    %p113 = por %p111, %p112
    %s115 = sadd.s32 %s114, 1
    %p118 = scmp.eq.s32.totalorder %s22, 1
    %p119 = scmp.ne.s32.totalorder %s114, %s116
    %p120 = scmp.eq.s32.totalorder %s22, 0
    %p121 = por %p119, %p120
    %p122 = scmp.ne.s32.totalorder %s114, %s116
    %p123 = scmp.eq.s32.totalorder %s27, 1
    %p124 = por %p122, %p123
    %p125 = scmp.ne.s32.totalorder %s116, %s117
    %p126 = scmp.eq.s32.totalorder %s27, 0
    %p127 = por %p125, %p126
    %p128 = scmp.ne.s32.totalorder %s116, %s117
    %p129 = scmp.eq.s32.totalorder %s28, 1
    %p130 = por %p128, %p129
    %p132 = scmp.ne.s32.totalorder %s117, %s131
    %p133 = scmp.eq.s32.totalorder %s28, 0
    %p134 = por %p132, %p133
    %s136 = sadd.s32 %s135, 1
    %p139 = scmp.eq.s32.totalorder %s22, 1
    %p140 = scmp.ne.s32.totalorder %s135, %s137
    %p141 = scmp.eq.s32.totalorder %s22, 0
    %p142 = por %p140, %p141
    %p143 = scmp.ne.s32.totalorder %s135, %s137
    %p144 = scmp.eq.s32.totalorder %s27, 1
    %p145 = por %p143, %p144
    %p146 = scmp.ne.s32.totalorder %s137, %s138
    %p147 = scmp.eq.s32.totalorder %s27, 0
    %p148 = por %p146, %p147
    %p149 = scmp.ne.s32.totalorder %s137, %s138
    %p150 = scmp.eq.s32.totalorder %s28, 1
    %p151 = por %p149, %p150
    %p153 = scmp.ne.s32.totalorder %s138, %s152
    %p154 = scmp.eq.s32.totalorder %s28, 0
    %p155 = por %p153, %p154
    %s157 = sadd.s32 %s156, 1
    %p160 = scmp.eq.s32.totalorder %s22, 1
    %p161 = scmp.ne.s32.totalorder %s156, %s158
    %p162 = scmp.eq.s32.totalorder %s22, 0
    %p163 = por %p161, %p162
    %p164 = scmp.ne.s32.totalorder %s156, %s158
    %p165 = scmp.eq.s32.totalorder %s27, 1
    %p166 = por %p164, %p165
    %p167 = scmp.ne.s32.totalorder %s158, %s159
    %p168 = scmp.eq.s32.totalorder %s27, 0
    %p169 = por %p167, %p168
    %p170 = scmp.ne.s32.totalorder %s158, %s159
    %p171 = scmp.eq.s32.totalorder %s28, 1
    %p172 = por %p170, %p171
    %p174 = scmp.ne.s32.totalorder %s159, %s173
    %p175 = scmp.eq.s32.totalorder %s28, 0
    %p176 = por %p174, %p175
    %s178 = sadd.s32 %s177, 1
    %p181 = scmp.eq.s32.totalorder %s22, 1
    %p182 = scmp.ne.s32.totalorder %s177, %s179
    %p183 = scmp.eq.s32.totalorder %s22, 0
    %p184 = por %p182, %p183
    %p185 = scmp.ne.s32.totalorder %s177, %s179
    %p186 = scmp.eq.s32.totalorder %s27, 1
    %p187 = por %p185, %p186
    %p188 = scmp.ne.s32.totalorder %s179, %s180
    %p189 = scmp.eq.s32.totalorder %s27, 0
    %p190 = por %p188, %p189
    %p191 = scmp.ne.s32.totalorder %s179, %s180
    %p192 = scmp.eq.s32.totalorder %s28, 1
    %p193 = por %p191, %p192
    %p195 = scmp.ne.s32.totalorder %s180, %s194
    %p196 = scmp.eq.s32.totalorder %s28, 0
    %p197 = por %p195, %p196
    %s199 = sadd.s32 %s198, 1
    %p202 = scmp.eq.s32.totalorder %s22, 1
    %p203 = scmp.ne.s32.totalorder %s198, %s200
    %p204 = scmp.eq.s32.totalorder %s22, 0
    %p205 = por %p203, %p204
    %p206 = scmp.ne.s32.totalorder %s198, %s200
    %p207 = scmp.eq.s32.totalorder %s27, 1
    %p208 = por %p206, %p207
    %p209 = scmp.ne.s32.totalorder %s200, %s201
    %p210 = scmp.eq.s32.totalorder %s27, 0
    %p211 = por %p209, %p210
    %p212 = scmp.ne.s32.totalorder %s200, %s201
    %p213 = scmp.eq.s32.totalorder %s28, 1
    %p214 = por %p212, %p213
    %p216 = scmp.ne.s32.totalorder %s201, %s215
    %p217 = scmp.eq.s32.totalorder %s28, 0
    %p218 = por %p216, %p217
    %s220 = sadd.s32 %s219, 1
    %p223 = scmp.eq.s32.totalorder %s22, 1
    %p224 = scmp.ne.s32.totalorder %s219, %s221
    %p225 = scmp.eq.s32.totalorder %s22, 0
    %p226 = por %p224, %p225
    %p227 = scmp.ne.s32.totalorder %s219, %s221
    %p228 = scmp.eq.s32.totalorder %s27, 1
    %p229 = por %p227, %p228
    %p230 = scmp.ne.s32.totalorder %s221, %s222
    %p231 = scmp.eq.s32.totalorder %s27, 0
    %p232 = por %p230, %p231
    %p233 = scmp.ne.s32.totalorder %s221, %s222
    %p234 = scmp.eq.s32.totalorder %s28, 1
    %p235 = por %p233, %p234
    %p237 = scmp.ne.s32.totalorder %s222, %s236
    %p238 = scmp.eq.s32.totalorder %s28, 0
    %p239 = por %p237, %p238
    %s241 = sadd.s32 %s240, 1
    %p244 = scmp.eq.s32.totalorder %s22, 1
    %p245 = scmp.ne.s32.totalorder %s240, %s242
    %p246 = scmp.eq.s32.totalorder %s22, 0
    %p247 = por %p245, %p246
    %p248 = scmp.ne.s32.totalorder %s240, %s242
    %p249 = scmp.eq.s32.totalorder %s27, 1
    %p250 = por %p248, %p249
    %p251 = scmp.ne.s32.totalorder %s242, %s243
    %p252 = scmp.eq.s32.totalorder %s27, 0
    %p253 = por %p251, %p252
    %p254 = scmp.ne.s32.totalorder %s242, %s243
    %p255 = scmp.eq.s32.totalorder %s28, 1
    %p256 = por %p254, %p255
    %p258 = scmp.ne.s32.totalorder %s243, %s257
    %p259 = scmp.eq.s32.totalorder %s28, 0
    %p260 = por %p258, %p259
    %s262 = sadd.s32 %s261, 1
    %p265 = scmp.eq.s32.totalorder %s22, 1
    %p266 = scmp.ne.s32.totalorder %s261, %s263
    %p267 = scmp.eq.s32.totalorder %s22, 0
    %p268 = por %p266, %p267
    %p269 = scmp.ne.s32.totalorder %s261, %s263
    %p270 = scmp.eq.s32.totalorder %s27, 1
    %p271 = por %p269, %p270
    %p272 = scmp.ne.s32.totalorder %s263, %s264
    %p273 = scmp.eq.s32.totalorder %s27, 0
    %p274 = por %p272, %p273
    %p275 = scmp.ne.s32.totalorder %s263, %s264
    %p276 = scmp.eq.s32.totalorder %s28, 1
    %p277 = por %p275, %p276
    %p279 = scmp.ne.s32.totalorder %s264, %s278
    %p280 = scmp.eq.s32.totalorder %s28, 0
    %p281 = por %p279, %p280
    %s283 = sadd.s32 %s282, 1
    %p286 = scmp.eq.s32.totalorder %s22, 1
    %p287 = scmp.ne.s32.totalorder %s282, %s284
    %p288 = scmp.eq.s32.totalorder %s22, 0
    %p289 = por %p287, %p288
    %p290 = scmp.ne.s32.totalorder %s282, %s284
    %p291 = scmp.eq.s32.totalorder %s27, 1
    %p292 = por %p290, %p291
    %p293 = scmp.ne.s32.totalorder %s284, %s285
    %p294 = scmp.eq.s32.totalorder %s27, 0
    %p295 = por %p293, %p294
    %p296 = scmp.ne.s32.totalorder %s284, %s285
    %p297 = scmp.eq.s32.totalorder %s28, 1
    %p298 = por %p296, %p297
    %p300 = scmp.ne.s32.totalorder %s285, %s299
    %p301 = scmp.eq.s32.totalorder %s28, 0
    %p302 = por %p300, %p301
    %s304 = sadd.s32 %s303, 1
    %p307 = scmp.eq.s32.totalorder %s22, 1
    %p308 = scmp.ne.s32.totalorder %s303, %s305
    %p309 = scmp.eq.s32.totalorder %s22, 0
    %p310 = por %p308, %p309
    %p311 = scmp.ne.s32.totalorder %s303, %s305
    %p312 = scmp.eq.s32.totalorder %s27, 1
    %p313 = por %p311, %p312
    %p314 = scmp.ne.s32.totalorder %s305, %s306
    %p315 = scmp.eq.s32.totalorder %s27, 0
    %p316 = por %p314, %p315
    %p317 = scmp.ne.s32.totalorder %s305, %s306
    %p318 = scmp.eq.s32.totalorder %s28, 1
    %p319 = por %p317, %p318
    %p321 = scmp.ne.s32.totalorder %s306, %s320
    %p322 = scmp.eq.s32.totalorder %s28, 0
    %p323 = por %p321, %p322
    %s325 = sadd.s32 %s324, 1
    %p328 = scmp.eq.s32.totalorder %s22, 1
    %p329 = scmp.ne.s32.totalorder %s324, %s326
    %p330 = scmp.eq.s32.totalorder %s22, 0
    %p331 = por %p329, %p330
    %p332 = scmp.ne.s32.totalorder %s324, %s326
    %p333 = scmp.eq.s32.totalorder %s27, 1
    %p334 = por %p332, %p333
    %p335 = scmp.ne.s32.totalorder %s326, %s327
    %p336 = scmp.eq.s32.totalorder %s27, 0
    %p337 = por %p335, %p336
    %p338 = scmp.ne.s32.totalorder %s326, %s327
    %p339 = scmp.eq.s32.totalorder %s28, 1
    %p340 = por %p338, %p339
    %p342 = scmp.ne.s32.totalorder %s327, %s341
    %p343 = scmp.eq.s32.totalorder %s28, 0
    %p344 = por %p342, %p343
    %s346 = sadd.s32 %s345, 1
    %p349 = scmp.eq.s32.totalorder %s22, 1
    %p350 = scmp.ne.s32.totalorder %s345, %s347
    %p351 = scmp.eq.s32.totalorder %s22, 0
    %p352 = por %p350, %p351
    %p353 = scmp.ne.s32.totalorder %s345, %s347
    %p354 = scmp.eq.s32.totalorder %s27, 1
    %p355 = por %p353, %p354
    %p356 = scmp.ne.s32.totalorder %s347, %s348
    %p357 = scmp.eq.s32.totalorder %s27, 0
    %p358 = por %p356, %p357
    %p359 = scmp.ne.s32.totalorder %s347, %s348
    %p360 = scmp.eq.s32.totalorder %s28, 1
    %p361 = por %p359, %p360
    %p363 = scmp.ne.s32.totalorder %s348, %s362
    %p364 = scmp.eq.s32.totalorder %s28, 0
    %p365 = por %p363, %p364
    %s367 = sadd.s32 %s366, 1
    %p370 = scmp.eq.s32.totalorder %s22, 1
    %p371 = scmp.ne.s32.totalorder %s366, %s368
    %p372 = scmp.eq.s32.totalorder %s22, 0
    %p373 = por %p371, %p372
    %p374 = scmp.ne.s32.totalorder %s366, %s368
    %p375 = scmp.eq.s32.totalorder %s27, 1
    %p376 = por %p374, %p375
    %p377 = scmp.ne.s32.totalorder %s368, %s369
    %p378 = scmp.eq.s32.totalorder %s27, 0
    %p379 = por %p377, %p378
    %p380 = scmp.ne.s32.totalorder %s368, %s369
    %p381 = scmp.eq.s32.totalorder %s28, 1
    %p382 = por %p380, %p381
    %p384 = scmp.ne.s32.totalorder %s369, %s383
    %p385 = scmp.eq.s32.totalorder %s28, 0
    %p386 = por %p384, %p385
    %p387 = scmp.le.s32.totalorder 1, %s22
    %p388 = scmp.lt.s32.totalorder %s22, 3
    %p389 = pnand %p387, %p388
    %p390 = pneg %p389
    // Predicated region
    $region9: #{prompt_model_forward.1} parent=5 // pred_check
      _
    $region10: #{prompt_model_forward.1} parent=5 // pred_check_branch
      %392 = sbr.rel (%p389) target = $region12
    $region11: #{prompt_model_forward.1} parent=5 // pred_region
      %s393 = ssub.s32 %s22, 1
      // Predicated region
      $region13: #{prompt_model_forward.1} parent=11 // pred_check
        %p394 = pneg %p43
      $region14: #{prompt_model_forward.1} parent=11 // pred_check_branch
        %396 = sbr.rel (%p394) target = $region16
      $region15: #{prompt_model_forward.1} parent=11 // pred_region
        _
      $region16: #{prompt_model_forward.1} parent=11 // pred_fallthru
        _
      // Predicated region
      $region17: #{prompt_model_forward.1} parent=11 // pred_check
        %p397 = pneg %p64
      $region18: #{prompt_model_forward.1} parent=11 // pred_check_branch
        %399 = sbr.rel (%p397) target = $region20
      $region19: #{prompt_model_forward.1} parent=11 // pred_region
        _
      $region20: #{prompt_model_forward.1} parent=11 // pred_fallthru
        _
      // Predicated region
      $region21: #{prompt_model_forward.1} parent=11 // pred_check
        %p400 = pneg %p85
      $region22: #{prompt_model_forward.1} parent=11 // pred_check_branch
        %402 = sbr.rel (%p400) target = $region24
      $region23: #{prompt_model_forward.1} parent=11 // pred_region
        _
      $region24: #{prompt_model_forward.1} parent=11 // pred_fallthru
        _
      // Predicated region
      $region25: #{prompt_model_forward.1} parent=11 // pred_check
        %p403 = pneg %p106
      $region26: #{prompt_model_forward.1} parent=11 // pred_check_branch
        %405 = sbr.rel (%p403) target = $region28
      $region27: #{prompt_model_forward.1} parent=11 // pred_region
        _
      $region28: #{prompt_model_forward.1} parent=11 // pred_fallthru
        _
      // Predicated region
      $region29: #{prompt_model_forward.1} parent=11 // pred_check
        %p406 = pneg %p127
      $region30: #{prompt_model_forward.1} parent=11 // pred_check_branch
        %408 = sbr.rel (%p406) target = $region32
      $region31: #{prompt_model_forward.1} parent=11 // pred_region
        _
      $region32: #{prompt_model_forward.1} parent=11 // pred_fallthru
        _
      // Predicated region
      $region33: #{prompt_model_forward.1} parent=11 // pred_check
        %p409 = pneg %p148
      $region34: #{prompt_model_forward.1} parent=11 // pred_check_branch
        %411 = sbr.rel (%p409) target = $region36
      $region35: #{prompt_model_forward.1} parent=11 // pred_region
        _
      $region36: #{prompt_model_forward.1} parent=11 // pred_fallthru
        _
      // Predicated region
      $region37: #{prompt_model_forward.1} parent=11 // pred_check
        %p412 = pneg %p169
      $region38: #{prompt_model_forward.1} parent=11 // pred_check_branch
        %414 = sbr.rel (%p412) target = $region40
      $region39: #{prompt_model_forward.1} parent=11 // pred_region
        _
      $region40: #{prompt_model_forward.1} parent=11 // pred_fallthru
        _
      // Predicated region
      $region41: #{prompt_model_forward.1} parent=11 // pred_check
        %p415 = pneg %p190
      $region42: #{prompt_model_forward.1} parent=11 // pred_check_branch
        %417 = sbr.rel (%p415) target = $region44
      $region43: #{prompt_model_forward.1} parent=11 // pred_region
        _
      $region44: #{prompt_model_forward.1} parent=11 // pred_fallthru
        _
      // Predicated region
      $region45: #{prompt_model_forward.1} parent=11 // pred_check
        %p418 = pneg %p211
      $region46: #{prompt_model_forward.1} parent=11 // pred_check_branch
        %420 = sbr.rel (%p418) target = $region48
      $region47: #{prompt_model_forward.1} parent=11 // pred_region
        _
      $region48: #{prompt_model_forward.1} parent=11 // pred_fallthru
        _
      // Predicated region
      $region49: #{prompt_model_forward.1} parent=11 // pred_check
        %p421 = pneg %p232
      $region50: #{prompt_model_forward.1} parent=11 // pred_check_branch
        %423 = sbr.rel (%p421) target = $region52
      $region51: #{prompt_model_forward.1} parent=11 // pred_region
        _
      $region52: #{prompt_model_forward.1} parent=11 // pred_fallthru
        _
      // Predicated region
      $region53: #{prompt_model_forward.1} parent=11 // pred_check
        %p424 = pneg %p253
      $region54: #{prompt_model_forward.1} parent=11 // pred_check_branch
        %426 = sbr.rel (%p424) target = $region56
      $region55: #{prompt_model_forward.1} parent=11 // pred_region
        _
      $region56: #{prompt_model_forward.1} parent=11 // pred_fallthru
        _
      // Predicated region
      $region57: #{prompt_model_forward.1} parent=11 // pred_check
        %p427 = pneg %p274
      $region58: #{prompt_model_forward.1} parent=11 // pred_check_branch
        %429 = sbr.rel (%p427) target = $region60
      $region59: #{prompt_model_forward.1} parent=11 // pred_region
        _
      $region60: #{prompt_model_forward.1} parent=11 // pred_fallthru
        _
      // Predicated region
      $region61: #{prompt_model_forward.1} parent=11 // pred_check
        %p430 = pneg %p295
      $region62: #{prompt_model_forward.1} parent=11 // pred_check_branch
        %432 = sbr.rel (%p430) target = $region64
      $region63: #{prompt_model_forward.1} parent=11 // pred_region
        _
      $region64: #{prompt_model_forward.1} parent=11 // pred_fallthru
        _
      // Predicated region
      $region65: #{prompt_model_forward.1} parent=11 // pred_check
        %p433 = pneg %p316
      $region66: #{prompt_model_forward.1} parent=11 // pred_check_branch
        %435 = sbr.rel (%p433) target = $region68
      $region67: #{prompt_model_forward.1} parent=11 // pred_region
        _
      $region68: #{prompt_model_forward.1} parent=11 // pred_fallthru
        _
      // Predicated region
      $region69: #{prompt_model_forward.1} parent=11 // pred_check
        %p436 = pneg %p337
      $region70: #{prompt_model_forward.1} parent=11 // pred_check_branch
        %438 = sbr.rel (%p436) target = $region72
      $region71: #{prompt_model_forward.1} parent=11 // pred_region
        _
      $region72: #{prompt_model_forward.1} parent=11 // pred_fallthru
        _
      // Predicated region
      $region73: #{prompt_model_forward.1} parent=11 // pred_check
        %p439 = pneg %p358
      $region74: #{prompt_model_forward.1} parent=11 // pred_check_branch
        %441 = sbr.rel (%p439) target = $region76
      $region75: #{prompt_model_forward.1} parent=11 // pred_region
        _
      $region76: #{prompt_model_forward.1} parent=11 // pred_fallthru
        _
    $region12: #{prompt_model_forward.1} parent=5 // pred_fallthru
      _
    %p442 = scmp.lt.s32.totalorder %s22, 2
    // Predicated region
    $region77: #{prompt_model_forward.1} parent=5 // pred_check
      %p443 = pneg %p442
    $region78: #{prompt_model_forward.1} parent=5 // pred_check_branch
      %445 = sbr.rel (%p443) target = $region80
    $region79: #{prompt_model_forward.1} parent=5 // pred_region
      _
    $region80: #{prompt_model_forward.1} parent=5 // pred_fallthru
      _
    %p446 = scmp.le.s32.totalorder 1, %s22
    %p447 = scmp.lt.s32.totalorder %s22, 3
    %p448 = pnand %p446, %p447
    %p449 = pneg %p448
    // Predicated region
    $region81: #{prompt_model_forward.1} parent=5 // pred_check
      _
    $region82: #{prompt_model_forward.1} parent=5 // pred_check_branch
      %451 = sbr.rel (%p448) target = $region84
    $region83: #{prompt_model_forward.1} parent=5 // pred_region
      %s452 = ssub.s32 %s22, 1
      %p453 = pneg %p43
      %p454 = pneg %p40
      %p455 = pneg %p64
      %p456 = pneg %p61
      %p457 = pneg %p85
      %p458 = pneg %p82
      %p459 = pneg %p106
      %p460 = pneg %p103
      %p461 = pneg %p127
      %p462 = pneg %p124
      %p463 = pneg %p148
      %p464 = pneg %p145
      %p465 = pneg %p169
      %p466 = pneg %p166
      %p467 = pneg %p190
      %p468 = pneg %p187
      %p469 = pneg %p211
      %p470 = pneg %p208
      %p471 = pneg %p232
      %p472 = pneg %p229
      %p473 = pneg %p253
      %p474 = pneg %p250
      %p475 = pneg %p274
      %p476 = pneg %p271
      %p477 = pneg %p295
      %p478 = pneg %p292
      %p479 = pneg %p316
      %p480 = pneg %p313
      %p481 = pneg %p337
      %p482 = pneg %p334
      %p483 = pneg %p358
      %p484 = pneg %p355
      %p485 = pneg %p379
      %p486 = pneg %p376
      %p488 = scmp.eq.s32.totalorder %s27, 0
      // Predicated region
      $region85: #{prompt_model_forward.1} parent=83 // pred_check
        %p489 = pneg %p488
      $region86: #{prompt_model_forward.1} parent=83 // pred_check_branch
        %491 = sbr.rel (%p489) target = $region88
      $region87: #{prompt_model_forward.1} parent=83 // pred_region
        %v492 = vld [vmem:[%s0] sm:$0xff]
        %v493 = vld [vmem:[%s0 + $0x8] sm:$0xff]
        %v494 = vld [vmem:[%s0 + $0x10] sm:$0xff]
        %v495 = vld [vmem:[%s0 + $0x18] sm:$0xff]
        %v496 = vld [vmem:[%s0 + $0x20] sm:$0xff]
        %v497 = vld [vmem:[%s0 + $0x28] sm:$0xff]
        %v498 = vpack.c.bf16 %v493, %v492
        %v499 = vpack.c.bf16 %v495, %v494
        %v500 = vpack.c.bf16 %v497, %v496
        %v501 = vld [vmem:[%s4] sm:$0xf]
        %v502 = vld [vmem:[%s4 + $0x4] sm:$0xf]
        %v503 = vld [vmem:[%s4 + $0x8] sm:$0xf]
        %v504 = vld [vmem:[%s4 + $0xc] sm:$0xf]
        %v505 = vld [vmem:[%s4 + $0x10] sm:$0xf]
        %v506 = vld [vmem:[%s4 + $0x14] sm:$0xf]
        %v507 = vld [vmem:[%s4 + $0x18] sm:$0xf]
        %v508 = vld [vmem:[%s4 + $0x1c] sm:$0xf]
        %v509 = vld [vmem:[%s4 + $0x20] sm:$0xf]
        %v510 = vld [vmem:[%s4 + $0x24] sm:$0xf]
        %v511 = vld [vmem:[%s4 + $0x28] sm:$0xf]
        %v512 = vld [vmem:[%s4 + $0x2c] sm:$0xf]
        %v513 = vld [vmem:[%s4 + $0x30] sm:$0xf]
        %v514 = vld [vmem:[%s4 + $0x34] sm:$0xf]
        %v515 = vld [vmem:[%s4 + $0x38] sm:$0xf]
        %v516 = vld [vmem:[%s4 + $0x3c] sm:$0xf]
        %v517 = vld [vmem:[%s5] sm:$0x1]
        %v519 = vperm.slane %v517, 0
        %v537 = vunpack.c.l.b16 %v501
        %v538 = vunpack.c.l.b16 %v502
        %v539 = vunpack.c.l.b16 %v503
        %v540 = vunpack.c.l.b16 %v504
        %v541 = vunpack.c.l.b16 %v505
        %v542 = vunpack.c.l.b16 %v506
        %v543 = vunpack.c.l.b16 %v507
        %v544 = vunpack.c.l.b16 %v508
        %v545 = vunpack.c.l.b16 %v509
        %v546 = vunpack.c.l.b16 %v510
        %v547 = vunpack.c.l.b16 %v511
        %v548 = vunpack.c.l.b16 %v512
        %v549 = vunpack.c.l.b16 %v513
        %v550 = vunpack.c.l.b16 %v514
        %v551 = vunpack.c.l.b16 %v515
        %v552 = vunpack.c.l.b16 %v516
        %v553 = vpack.c.b16 %v538, %v537
        %v554 = vpack.c.b16 %v540, %v539
        %v555 = vpack.c.b16 %v542, %v541
        %v556 = vpack.c.b16 %v544, %v543
        %v557 = vpack.c.b16 %v546, %v545
        %v558 = vpack.c.b16 %v548, %v547
        %v559 = vpack.c.b16 %v550, %v549
        %v560 = vpack.c.b16 %v552, %v551
        %569 = vmatpush.bf16.msra.mxu0 %v560
        %570 = vmatpush.bf16.msra.mxu0 %v559
        %571 = vmatpush.bf16.msra.mxu0 %v558
        %572 = vmatpush.bf16.msra.mxu0 %v557
        %573 = vmatpush.bf16.msra.mxu0 %v556
        %574 = vmatpush.bf16.msra.mxu0 %v555
        %575 = vmatpush.bf16.msra.mxu0 %v554
        %576 = vmatpush.bf16.msra.mxu0 %v553
        %577 = vmatmul.bf16.gmra.mxu0 %v498
        %v578 = vpop.f32.mrf.mxu0
        %v579 = vadd.f32 %v519, %v578
        %v580 = vpop.f32.mrf.mxu0
        %v581 = vadd.f32 %v519, %v580
        %582 = vmatmul.bf16.gmra.mxu0 %v499
        %v583 = vpop.f32.mrf.mxu0
        %v584 = vadd.f32 %v519, %v583
        %v585 = vpop.f32.mrf.mxu0
        %v586 = vadd.f32 %v519, %v585
        %587 = vmatmul.bf16.gmra.mxu0 %v500
        %v588 = vpop.f32.mrf.mxu0
        %v589 = vadd.f32 %v519, %v588
        %v590 = vpop.f32.mrf.mxu0
        %v591 = vadd.f32 %v519, %v590
        %592 = vdwg.mxu0
        %v593 = vmul.f32 %v579, 0.18215
        %v594 = vmul.f32 %v581, 0.18215
        %v595 = vmul.f32 %v584, 0.18215
        %v596 = vmul.f32 %v586, 0.18215
        %v597 = vmul.f32 %v589, 0.18215
        %v598 = vmul.f32 %v591, 0.18215
        %v599 = vmul.f32 %v593, 0.8681544
        %v600 = vmul.f32 %v594, 0.8681544
        %v601 = vmul.f32 %v595, 0.8681544
        %v602 = vmul.f32 %v596, 0.8681544
        %v603 = vmul.f32 %v597, 0.8681544
        %v604 = vmul.f32 %v598, 0.8681544
        %v605 = vld [vmem:[%s1] sm:$0xff]
        %v606 = vld [vmem:[%s1 + $0x8] sm:$0xff]
        %v607 = vld [vmem:[%s1 + $0x10] sm:$0xff]
        %v608 = vld [vmem:[%s1 + $0x18] sm:$0xff]
        %v609 = vld [vmem:[%s1 + $0x20] sm:$0xff]
        %v610 = vld [vmem:[%s1 + $0x28] sm:$0xff]
        %v611 = vmul.f32 %v605, 0.49629423
        %v612 = vmul.f32 %v606, 0.49629423
        %v613 = vmul.f32 %v607, 0.49629423
        %v614 = vmul.f32 %v608, 0.49629423
        %v615 = vmul.f32 %v609, 0.49629423
        %v616 = vmul.f32 %v610, 0.49629423
        %v617 = vadd.f32 %v599, %v611
        %v618 = vadd.f32 %v600, %v612
        %v619 = vadd.f32 %v601, %v613
        %v620 = vadd.f32 %v602, %v614
        %v621 = vadd.f32 %v603, %v615
        %v622 = vadd.f32 %v604, %v616
        %623 = vst [vmem:[#allocation2] sm:$0xff] %v617
        %624 = vst [vmem:[#allocation2 + $0x8] sm:$0xff] %v618
        %625 = vst [vmem:[#allocation2 + $0x10] sm:$0xff] %v619
        %626 = vst [vmem:[#allocation2 + $0x18] sm:$0xff] %v620
        %627 = vst [vmem:[#allocation2 + $0x20] sm:$0xff] %v621
        %628 = vst [vmem:[#allocation2 + $0x28] sm:$0xff] %v622
        %v629 = vld [vmem:[%s3] sm:$0xff]
        %v630 = vld [vmem:[%s3 + $0x8] sm:$0xff]
        %v631 = vpack.c.bf16 %v630, %v629
        %v632 = vld [vmem:[%s10] sm:$0xff]
        %v633 = vld [vmem:[%s10 + $0x8] sm:$0xff]
        %v634 = vld [vmem:[%s10 + $0x10] sm:$0xff]
        %v635 = vld [vmem:[%s10 + $0x18] sm:$0xff]
        %v636 = vld [vmem:[%s10 + $0x20] sm:$0xff]
        %v637 = vld [vmem:[%s10 + $0x28] sm:$0xff]
        %v638 = vld [vmem:[%s10 + $0x30] sm:$0xff]
        %v639 = vld [vmem:[%s10 + $0x38] sm:$0xff]
        %v640 = vld [vmem:[%s10 + $0x40] sm:$0xff]
        %v641 = vld [vmem:[%s10 + $0x48] sm:$0xff]
        %v642 = vld [vmem:[%s10 + $0x50] sm:$0xff]
        %v643 = vld [vmem:[%s10 + $0x58] sm:$0xff]
        %v644 = vld [vmem:[%s10 + $0x60] sm:$0xff]
        %v645 = vld [vmem:[%s10 + $0x68] sm:$0xff]
        %v646 = vld [vmem:[%s10 + $0x70] sm:$0xff]
        %v647 = vld [vmem:[%s10 + $0x78] sm:$0xff]
        %v648 = vld [vmem:[%s11] sm:$0x3]
        %v650 = vperm.slane %v648, 0
        %v651 = vperm.slane %v648, 1
        %v670 = vunpack.c.l.b16 %v632
        %v671 = vunpack.c.h.b16 %v632
        %v672 = vunpack.c.l.b16 %v633
        %v673 = vunpack.c.h.b16 %v633
        %v674 = vunpack.c.l.b16 %v634
        %v675 = vunpack.c.h.b16 %v634
        %v676 = vunpack.c.l.b16 %v635
        %v677 = vunpack.c.h.b16 %v635
        %v678 = vunpack.c.l.b16 %v636
        %v679 = vunpack.c.h.b16 %v636
        %v680 = vunpack.c.l.b16 %v637
        %v681 = vunpack.c.h.b16 %v637
        %v682 = vunpack.c.l.b16 %v638
        %v683 = vunpack.c.h.b16 %v638
        %v684 = vunpack.c.l.b16 %v639
        %v685 = vunpack.c.h.b16 %v639
        %v686 = vunpack.c.l.b16 %v640
        %v687 = vunpack.c.h.b16 %v640
        %v688 = vunpack.c.l.b16 %v641
        %v689 = vunpack.c.h.b16 %v641
        %v690 = vunpack.c.l.b16 %v642
        %v691 = vunpack.c.h.b16 %v642
        %v692 = vunpack.c.l.b16 %v643
        %v693 = vunpack.c.h.b16 %v643
        %v694 = vunpack.c.l.b16 %v644
        %v695 = vunpack.c.h.b16 %v644
        %v696 = vunpack.c.l.b16 %v645
        %v697 = vunpack.c.h.b16 %v645
        %v698 = vunpack.c.l.b16 %v646
        %v699 = vunpack.c.h.b16 %v646
        %v700 = vunpack.c.l.b16 %v647
        %v701 = vunpack.c.h.b16 %v647
        %v702 = vpack.c.b16 %v672, %v670
        %v703 = vpack.c.b16 %v673, %v671
        %v704 = vpack.c.b16 %v676, %v674
        %v705 = vpack.c.b16 %v677, %v675
        %v706 = vpack.c.b16 %v680, %v678
        %v707 = vpack.c.b16 %v681, %v679
        %v708 = vpack.c.b16 %v684, %v682
        %v709 = vpack.c.b16 %v685, %v683
        %v710 = vpack.c.b16 %v688, %v686
        %v711 = vpack.c.b16 %v689, %v687
        %v712 = vpack.c.b16 %v692, %v690
        %v713 = vpack.c.b16 %v693, %v691
        %v714 = vpack.c.b16 %v696, %v694
        %v715 = vpack.c.b16 %v697, %v695
        %v716 = vpack.c.b16 %v700, %v698
        %v717 = vpack.c.b16 %v701, %v699
        %734 = vmatpush.bf16.msra.mxu0 %v716
        %735 = vmatpush.bf16.msra.mxu0 %v714
        %736 = vmatpush.bf16.msra.mxu0 %v712
        %737 = vmatpush.bf16.msra.mxu0 %v710
        %738 = vmatpush.bf16.msra.mxu0 %v708
        %739 = vmatpush.bf16.msra.mxu0 %v706
        %740 = vmatpush.bf16.msra.mxu0 %v704
        %741 = vmatpush.bf16.msra.mxu0 %v702
        %742 = vmatmul.bf16.gmra.mxu0 %v631
        %v743 = vpop.f32.mrf.mxu0
        %v744 = vadd.f32 %v650, %v743
        %v745 = vpop.f32.mrf.mxu0
        %v746 = vadd.f32 %v650, %v745
        %747 = vdwg.mxu0
        %748 = vmatpush.bf16.msra.mxu0 %v717
        %749 = vmatpush.bf16.msra.mxu0 %v715
        %750 = vmatpush.bf16.msra.mxu0 %v713
        %751 = vmatpush.bf16.msra.mxu0 %v711
        %752 = vmatpush.bf16.msra.mxu0 %v709
        %753 = vmatpush.bf16.msra.mxu0 %v707
        %754 = vmatpush.bf16.msra.mxu0 %v705
        %755 = vmatpush.bf16.msra.mxu0 %v703
        %756 = vmatmul.bf16.gmra.mxu0 %v631
        %v757 = vpop.f32.mrf.mxu0
        %v758 = vadd.f32 %v651, %v757
        %v759 = vpop.f32.mrf.mxu0
        %v760 = vadd.f32 %v651, %v759
        %761 = vdwg.mxu0
        %v762 = vpack.c.bf16 %v758, %v744
        %v763 = vpack.c.bf16 %v760, %v746
        %764 = vst [vmem:[#allocation3] sm:$0xff] %v762
        %765 = vst [vmem:[#allocation3 + $0x8] sm:$0xff] %v763
      $region88: #{prompt_model_forward.1} parent=83 // pred_fallthru
        _
      %v766 = vld [vmem:[%s2] sm:$0x3]
      %v767 = vpack.c.bf16 %v766, %v766
      %v768 = vld [vmem:[%s6] sm:$0xf]
      %v769 = vld [vmem:[%s6 + $0x4] sm:$0xf]
      %v770 = vld [vmem:[%s6 + $0x8] sm:$0xf]
      %v771 = vld [vmem:[%s6 + $0xc] sm:$0xf]
      %v772 = vld [vmem:[%s6 + $0x10] sm:$0xf]
      %v773 = vld [vmem:[%s6 + $0x14] sm:$0xf]
      %v774 = vld [vmem:[%s6 + $0x18] sm:$0xf]
      %v775 = vld [vmem:[%s6 + $0x1c] sm:$0xf]
      %v776 = vld [vmem:[%s6 + $0x20] sm:$0xf]
      %v777 = vld [vmem:[%s6 + $0x24] sm:$0xf]
      %v778 = vld [vmem:[%s6 + $0x28] sm:$0xf]
      %v779 = vld [vmem:[%s6 + $0x2c] sm:$0xf]
      %v780 = vld [vmem:[%s6 + $0x30] sm:$0xf]
      %v781 = vld [vmem:[%s6 + $0x34] sm:$0xf]
      %v782 = vld [vmem:[%s6 + $0x38] sm:$0xf]
      %v783 = vld [vmem:[%s6 + $0x3c] sm:$0xf]
      %v784 = vld [vmem:[%s7] sm:$0x1]
      %v786 = vperm.slane %v784, 0
      %v804 = vunpack.c.l.b16 %v768
      %v805 = vunpack.c.l.b16 %v769
      %v806 = vunpack.c.l.b16 %v770
      %v807 = vunpack.c.l.b16 %v771
      %v808 = vunpack.c.l.b16 %v772
      %v809 = vunpack.c.l.b16 %v773
      %v810 = vunpack.c.l.b16 %v774
      %v811 = vunpack.c.l.b16 %v775
      %v812 = vunpack.c.l.b16 %v776
      %v813 = vunpack.c.l.b16 %v777
      %v814 = vunpack.c.l.b16 %v778
      %v815 = vunpack.c.l.b16 %v779
      %v816 = vunpack.c.l.b16 %v780
      %v817 = vunpack.c.l.b16 %v781
      %v818 = vunpack.c.l.b16 %v782
      %v819 = vunpack.c.l.b16 %v783
      %v820 = vpack.c.b16 %v805, %v804
      %v821 = vpack.c.b16 %v807, %v806
      %v822 = vpack.c.b16 %v809, %v808
      %v823 = vpack.c.b16 %v811, %v810
      %v824 = vpack.c.b16 %v813, %v812
      %v825 = vpack.c.b16 %v815, %v814
      %v826 = vpack.c.b16 %v817, %v816
      %v827 = vpack.c.b16 %v819, %v818
      %836 = vmatpush.bf16.msra.mxu0 %v827
      %837 = vmatpush.bf16.msra.mxu0 %v826
      %838 = vmatpush.bf16.msra.mxu0 %v825
      %839 = vmatpush.bf16.msra.mxu0 %v824
      %840 = vmatpush.bf16.msra.mxu0 %v823
      %841 = vmatpush.bf16.msra.mxu0 %v822
      %842 = vmatpush.bf16.msra.mxu0 %v821
      %843 = vmatpush.bf16.msra.mxu0 %v820
      %844 = vmatmul.bf16.gmra.mxu0 %v767
      %v845 = vpop.f32.mrf.mxu0
      %v846 = vadd.f32 %v786, %v845
      %v847 = vpop.f32.mrf.mxu0
      %848 = vdwg.mxu0
      %v849 = vxor.u32 %v846, 2147483648
      %v850 = vmul.f32 %v849, 1.442695
      %v851 = vpow.pop %v850
      %v852 = vadd.f32 %v851, 1.0
      %v853 = vrcp.pop %v852
      %v854 = vmul.f32 %v852, %v853
      %v855 = vsub.f32 1.0, %v854
      %v856 = vmul.f32 %v853, %v855
      %v857 = vadd.f32 %v853, %v856
      %vm858 = vweird.f32 %v852
      %vm859 = vweird.f32 %v853
      %vm860 = vmor %vm858, %vm859
      %v861 = vsel %vm860, %v853, %v857
      %v862 = vand.u32 2147483647, %v852
      %vm863 = vcmp.eq.f32.partialorder %v862, 8.507059e+37
      %v864 = vand.u32 %v852, 2147483648
      %v865 = vor.u32 1.1754944e-38, %v864
      %v866 = vsel %vm863, %v865, %v861
      %v867 = vmul.f32 1.0, %v866
      %v868 = vmul.f32 %v846, %v867
      %v869 = vpack.c.bf16 %v868, %v868
      %v870 = vld [vmem:[%s8] sm:$0xf]
      %v871 = vld [vmem:[%s8 + $0x4] sm:$0xf]
      %v872 = vld [vmem:[%s8 + $0x8] sm:$0xf]
      %v873 = vld [vmem:[%s8 + $0xc] sm:$0xf]
      %v874 = vld [vmem:[%s8 + $0x10] sm:$0xf]
      %v875 = vld [vmem:[%s8 + $0x14] sm:$0xf]
      %v876 = vld [vmem:[%s8 + $0x18] sm:$0xf]
      %v877 = vld [vmem:[%s8 + $0x1c] sm:$0xf]
      %v878 = vld [vmem:[%s8 + $0x20] sm:$0xf]
      %v879 = vld [vmem:[%s8 + $0x24] sm:$0xf]
      %v880 = vld [vmem:[%s8 + $0x28] sm:$0xf]
      %v881 = vld [vmem:[%s8 + $0x2c] sm:$0xf]
      %v882 = vld [vmem:[%s8 + $0x30] sm:$0xf]
      %v883 = vld [vmem:[%s8 + $0x34] sm:$0xf]
      %v884 = vld [vmem:[%s8 + $0x38] sm:$0xf]
      %v885 = vld [vmem:[%s8 + $0x3c] sm:$0xf]
      %v886 = vld [vmem:[%s9] sm:$0x1]
      %v888 = vperm.slane %v886, 0
      %v906 = vunpack.c.l.b16 %v870
      %v907 = vunpack.c.l.b16 %v871
      %v908 = vunpack.c.l.b16 %v872
      %v909 = vunpack.c.l.b16 %v873
      %v910 = vunpack.c.l.b16 %v874
      %v911 = vunpack.c.l.b16 %v875
      %v912 = vunpack.c.l.b16 %v876
      %v913 = vunpack.c.l.b16 %v877
      %v914 = vunpack.c.l.b16 %v878
      %v915 = vunpack.c.l.b16 %v879
      %v916 = vunpack.c.l.b16 %v880
      %v917 = vunpack.c.l.b16 %v881
      %v918 = vunpack.c.l.b16 %v882
      %v919 = vunpack.c.l.b16 %v883
      %v920 = vunpack.c.l.b16 %v884
      %v921 = vunpack.c.l.b16 %v885
      %v922 = vpack.c.b16 %v907, %v906
      %v923 = vpack.c.b16 %v909, %v908
      %v924 = vpack.c.b16 %v911, %v910
      %v925 = vpack.c.b16 %v913, %v912
      %v926 = vpack.c.b16 %v915, %v914
      %v927 = vpack.c.b16 %v917, %v916
      %v928 = vpack.c.b16 %v919, %v918
      %v929 = vpack.c.b16 %v921, %v920
      %938 = vmatpush.bf16.msra.mxu0 %v929
      %939 = vmatpush.bf16.msra.mxu0 %v928
      %940 = vmatpush.bf16.msra.mxu0 %v927
      %941 = vmatpush.bf16.msra.mxu0 %v926
      %942 = vmatpush.bf16.msra.mxu0 %v925
      %943 = vmatpush.bf16.msra.mxu0 %v924
      %944 = vmatpush.bf16.msra.mxu0 %v923
      %945 = vmatpush.bf16.msra.mxu0 %v922
      %946 = vmatmul.bf16.gmra.mxu0 %v869
      %v947 = vpop.f32.mrf.mxu0
      %v948 = vadd.f32 %v888, %v947
      %v949 = vpop.f32.mrf.mxu0
      %950 = vdwg.mxu0
      %v951 = vlaneseq
      %v952 = vshrl.u32 %v951, 7
      %v953 = vstv %s27
      %vm954 = vcmp.eq.s32.totalorder %v952, %v953
      %v955 = vsel %vm954, %v948, 0.0
      %vm956 = vcmask 1041408
      %v957 = vsel %vm956, %v955, 0.0
      %v958 = vrot.slane %v957, 4
      %v959 = vadd.f32 %v957, %v958
      %v960 = vrot.slane %v959, 2
      %v961 = vadd.f32 %v959, %v960
      %v962 = vrot.slane %v961, 1
      %v963 = vadd.f32 %v961, %v962
      %v964 = vld [vmem:[#allocation2] sm:$0xff]
      %v965 = vld [vmem:[#allocation2 + $0x8] sm:$0xff]
      %v966 = vld [vmem:[#allocation2 + $0x10] sm:$0xff]
      %v967 = vld [vmem:[#allocation2 + $0x18] sm:$0xff]
      %v968 = vld [vmem:[#allocation2 + $0x20] sm:$0xff]
      %v969 = vld [vmem:[#allocation2 + $0x28] sm:$0xff]
      %v970 = vpack.c.bf16 %v965, %v964
      %v971 = vpack.c.bf16 %v967, %v966
      %v972 = vpack.c.bf16 %v969, %v968
      %v973 = vld [vmem:[%s12] sm:$0xf]
      %v974 = vld [vmem:[%s12 + $0x4] sm:$0xf]
      %v975 = vld [vmem:[%s12 + $0x8] sm:$0xf]
      %v976 = vld [vmem:[%s12 + $0xc] sm:$0xf]
      %v977 = vld [vmem:[%s12 + $0x10] sm:$0xf]
      %v978 = vld [vmem:[%s12 + $0x14] sm:$0xf]
      %v979 = vld [vmem:[%s12 + $0x18] sm:$0xf]
      %v980 = vld [vmem:[%s12 + $0x1c] sm:$0xf]
      %v981 = vld [vmem:[%s12 + $0x20] sm:$0xf]
      %v982 = vld [vmem:[%s12 + $0x24] sm:$0xf]
      %v983 = vld [vmem:[%s12 + $0x28] sm:$0xf]
      %v984 = vld [vmem:[%s12 + $0x2c] sm:$0xf]
      %v985 = vld [vmem:[%s12 + $0x30] sm:$0xf]
      %v986 = vld [vmem:[%s12 + $0x34] sm:$0xf]
      %v987 = vld [vmem:[%s12 + $0x38] sm:$0xf]
      %v988 = vld [vmem:[%s12 + $0x3c] sm:$0xf]
      %v989 = vld [vmem:[%s13] sm:$0x1]
      %v990 = vperm.slane %v989, 0
      %v1007 = vunpack.c.l.b16 %v973
      %v1008 = vunpack.c.l.b16 %v974
      %v1009 = vunpack.c.l.b16 %v975
      %v1010 = vunpack.c.l.b16 %v976
      %v1011 = vunpack.c.l.b16 %v977
      %v1012 = vunpack.c.l.b16 %v978
      %v1013 = vunpack.c.l.b16 %v979
      %v1014 = vunpack.c.l.b16 %v980
      %v1015 = vunpack.c.l.b16 %v981
      %v1016 = vunpack.c.l.b16 %v982
      %v1017 = vunpack.c.l.b16 %v983
      %v1018 = vunpack.c.l.b16 %v984
      %v1019 = vunpack.c.l.b16 %v985
      %v1020 = vunpack.c.l.b16 %v986
      %v1021 = vunpack.c.l.b16 %v987
      %v1022 = vunpack.c.l.b16 %v988
      %v1023 = vpack.c.b16 %v1008, %v1007
      %v1024 = vpack.c.b16 %v1010, %v1009
      %v1025 = vpack.c.b16 %v1012, %v1011
      %v1026 = vpack.c.b16 %v1014, %v1013
      %v1027 = vpack.c.b16 %v1016, %v1015
      %v1028 = vpack.c.b16 %v1018, %v1017
      %v1029 = vpack.c.b16 %v1020, %v1019
      %v1030 = vpack.c.b16 %v1022, %v1021
      %1039 = vmatpush.bf16.msra.mxu0 %v1030
      %1040 = vmatpush.bf16.msra.mxu0 %v1029
      %1041 = vmatpush.bf16.msra.mxu0 %v1028
      %1042 = vmatpush.bf16.msra.mxu0 %v1027
      %1043 = vmatpush.bf16.msra.mxu0 %v1026
      %1044 = vmatpush.bf16.msra.mxu0 %v1025
      %1045 = vmatpush.bf16.msra.mxu0 %v1024
      %1046 = vmatpush.bf16.msra.mxu0 %v1023
      %1047 = vmatmul.bf16.gmra.mxu0 %v970
      %v1048 = vpop.f32.mrf.mxu0
      %v1049 = vadd.f32 %v990, %v1048
      %v1050 = vpop.f32.mrf.mxu0
      %v1051 = vadd.f32 %v990, %v1050
      %1052 = vmatmul.bf16.gmra.mxu0 %v971
      %v1053 = vpop.f32.mrf.mxu0
      %v1054 = vadd.f32 %v990, %v1053
      %v1055 = vpop.f32.mrf.mxu0
      %v1056 = vadd.f32 %v990, %v1055
      %1057 = vmatmul.bf16.gmra.mxu0 %v972
      %v1058 = vpop.f32.mrf.mxu0
      %v1059 = vadd.f32 %v990, %v1058
      %v1060 = vpop.f32.mrf.mxu0
      %v1061 = vadd.f32 %v990, %v1060
      %1062 = vdwg.mxu0
      %v1063 = vadd.f32 %v1049, %v963
      %v1064 = vadd.f32 %v1051, %v963
      %v1065 = vadd.f32 %v1054, %v963
      %v1066 = vadd.f32 %v1056, %v963
      %v1067 = vadd.f32 %v1059, %v963
      %v1068 = vadd.f32 %v1061, %v963
      %v1069 = vpack.c.bf16 %v1064, %v1063
      %v1070 = vpack.c.bf16 %v1066, %v1065
      %v1071 = vpack.c.bf16 %v1068, %v1067
      %s1072 = scalar_lea.vmem %s12, 64
      %v1073 = vld [vmem:[%s1072] sm:$0xf]
      %v1074 = vld [vmem:[%s1072 + $0x4] sm:$0xf]
      %v1075 = vld [vmem:[%s1072 + $0x8] sm:$0xf]
      %v1076 = vld [vmem:[%s1072 + $0xc] sm:$0xf]
      %v1077 = vld [vmem:[%s1072 + $0x10] sm:$0xf]
      %v1078 = vld [vmem:[%s1072 + $0x14] sm:$0xf]
      %v1079 = vld [vmem:[%s1072 + $0x18] sm:$0xf]
      %v1080 = vld [vmem:[%s1072 + $0x1c] sm:$0xf]
      %v1081 = vld [vmem:[%s1072 + $0x20] sm:$0xf]
      %v1082 = vld [vmem:[%s1072 + $0x24] sm:$0xf]
      %v1083 = vld [vmem:[%s1072 + $0x28] sm:$0xf]
      %v1084 = vld [vmem:[%s1072 + $0x2c] sm:$0xf]
      %v1085 = vld [vmem:[%s1072 + $0x30] sm:$0xf]
      %v1086 = vld [vmem:[%s1072 + $0x34] sm:$0xf]
      %v1087 = vld [vmem:[%s1072 + $0x38] sm:$0xf]
      %v1088 = vld [vmem:[%s1072 + $0x3c] sm:$0xf]
      %v1089 = vld [vmem:[%s13 + $0x1] sm:$0x1]
      %v1090 = vperm.slane %v1089, 0
      %v1107 = vunpack.c.l.b16 %v1073
      %v1108 = vunpack.c.l.b16 %v1074
      %v1109 = vunpack.c.l.b16 %v1075
      %v1110 = vunpack.c.l.b16 %v1076
      %v1111 = vunpack.c.l.b16 %v1077
      %v1112 = vunpack.c.l.b16 %v1078
      %v1113 = vunpack.c.l.b16 %v1079
      %v1114 = vunpack.c.l.b16 %v1080
      %v1115 = vunpack.c.l.b16 %v1081
      %v1116 = vunpack.c.l.b16 %v1082
      %v1117 = vunpack.c.l.b16 %v1083
      %v1118 = vunpack.c.l.b16 %v1084
      %v1119 = vunpack.c.l.b16 %v1085
      %v1120 = vunpack.c.l.b16 %v1086
      %v1121 = vunpack.c.l.b16 %v1087
      %v1122 = vunpack.c.l.b16 %v1088
      %v1123 = vpack.c.b16 %v1108, %v1107
      %v1124 = vpack.c.b16 %v1110, %v1109
      %v1125 = vpack.c.b16 %v1112, %v1111
      %v1126 = vpack.c.b16 %v1114, %v1113
      %v1127 = vpack.c.b16 %v1116, %v1115
      %v1128 = vpack.c.b16 %v1118, %v1117
      %v1129 = vpack.c.b16 %v1120, %v1119
      %v1130 = vpack.c.b16 %v1122, %v1121
      %1139 = vmatpush.bf16.msra.mxu0 %v1130
      %1140 = vmatpush.bf16.msra.mxu0 %v1129
      %1141 = vmatpush.bf16.msra.mxu0 %v1128
      %1142 = vmatpush.bf16.msra.mxu0 %v1127
      %1143 = vmatpush.bf16.msra.mxu0 %v1126
      %1144 = vmatpush.bf16.msra.mxu0 %v1125
      %1145 = vmatpush.bf16.msra.mxu0 %v1124
      %1146 = vmatpush.bf16.msra.mxu0 %v1123
      %1147 = vmatmul.bf16.gmra.mxu0 %v1069
      %v1148 = vpop.f32.mrf.mxu0
      %v1149 = vadd.f32 %v1090, %v1148
      %v1150 = vpop.f32.mrf.mxu0
      %v1151 = vadd.f32 %v1090, %v1150
      %1152 = vmatmul.bf16.gmra.mxu0 %v1070
      %v1153 = vpop.f32.mrf.mxu0
      %v1154 = vadd.f32 %v1090, %v1153
      %v1155 = vpop.f32.mrf.mxu0
      %v1156 = vadd.f32 %v1090, %v1155
      %1157 = vmatmul.bf16.gmra.mxu0 %v1071
      %v1158 = vpop.f32.mrf.mxu0
      %v1159 = vadd.f32 %v1090, %v1158
      %v1160 = vpop.f32.mrf.mxu0
      %v1161 = vadd.f32 %v1090, %v1160
      %1162 = vdwg.mxu0
      %v1163 = vpack.c.bf16 %v1151, %v1149
      %v1164 = vpack.c.bf16 %v1156, %v1154
      %v1165 = vpack.c.bf16 %v1161, %v1159
      %v1166 = vld [vmem:[#allocation3] sm:$0xff]
      %v1167 = vld [vmem:[#allocation3 + $0x8] sm:$0xff]
      %v1170 = vunpack.c.l.b16 %v1166
      %v1171 = vunpack.c.l.b16 %v1167
      %v1172 = vpack.c.b16 %v1171, %v1170
      %1174 = vmatpush.bf16.xpose.msra.mxu0 0
      %1175 = vmatpush.bf16.xpose.msra.mxu0 0
      %1176 = vmatpush.bf16.xpose.msra.mxu0 0
      %1177 = vmatpush.bf16.xpose.msra.mxu0 0
      %1178 = vmatpush.bf16.xpose.msra.mxu0 0
      %1179 = vmatpush.bf16.xpose.msra.mxu0 0
      %1180 = vmatpush.bf16.xpose.msra.mxu0 0
      %1181 = vmatpush.bf16.xpose.msra.mxu0 %v1172
      %1182 = vmatmul.bf16.gmra.mxu0 %v1163
      %v1183 = vpop.f32.mrf.mxu0
      %v1184 = vadd.f32 0.0, %v1183
      %v1185 = vpop.f32.mrf.mxu0
      %v1186 = vadd.f32 0.0, %v1185
      %1187 = vmatmul.bf16.gmra.mxu0 %v1164
      %v1188 = vpop.f32.mrf.mxu0
      %v1189 = vadd.f32 0.0, %v1188
      %v1190 = vpop.f32.mrf.mxu0
      %v1191 = vadd.f32 0.0, %v1190
      %1192 = vmatmul.bf16.gmra.mxu0 %v1165
      %v1193 = vpop.f32.mrf.mxu0
      %v1194 = vadd.f32 0.0, %v1193
      %v1195 = vpop.f32.mrf.mxu0
      %v1196 = vadd.f32 0.0, %v1195
      %1197 = vdwg.mxu0
      %v1198 = vmul.f32 %v1184, 0.088388346
      %v1199 = vmul.f32 %v1186, 0.088388346
      %v1200 = vmul.f32 %v1189, 0.088388346
      %v1201 = vmul.f32 %v1191, 0.088388346
      %v1202 = vmul.f32 %v1194, 0.088388346
      %v1203 = vmul.f32 %v1196, 0.088388346
      %vm1204 = vcmask 64512
      %v1205 = vsel %vm1204, %v1198, -inf
      %1206 = vmax.xlane.f32.xlu0 %v1205
      %v1207 = vpop.xlane.xlu0 %1206
      %v1208 = vsel %vm1204, %v1199, -inf
      %1209 = vmax.xlane.f32.xlu0 %v1208
      %v1210 = vpop.xlane.xlu0 %1209
      %v1211 = vsel %vm1204, %v1200, -inf
      %1212 = vmax.xlane.f32.xlu0 %v1211
      %v1213 = vpop.xlane.xlu0 %1212
      %v1214 = vsel %vm1204, %v1201, -inf
      %1215 = vmax.xlane.f32.xlu0 %v1214
      %v1216 = vpop.xlane.xlu0 %1215
      %v1217 = vsel %vm1204, %v1202, -inf
      %1218 = vmax.xlane.f32.xlu0 %v1217
      %v1219 = vpop.xlane.xlu0 %1218
      %v1220 = vsel %vm1204, %v1203, -inf
      %1221 = vmax.xlane.f32.xlu0 %v1220
      %v1222 = vpop.xlane.xlu0 %1221
      %v1223 = vsub.f32 %v1198, %v1207
      %v1224 = vsub.f32 %v1199, %v1210
      %v1225 = vsub.f32 %v1200, %v1213
      %v1226 = vsub.f32 %v1201, %v1216
      %v1227 = vsub.f32 %v1202, %v1219
      %v1228 = vsub.f32 %v1203, %v1222
      %v1229 = vmul.f32 %v1223, 1.442695
      %v1230 = vpow.pop %v1229
      %v1231 = vmul.f32 %v1224, 1.442695
      %v1232 = vpow.pop %v1231
      %v1233 = vmul.f32 %v1225, 1.442695
      %v1234 = vpow.pop %v1233
      %v1235 = vmul.f32 %v1226, 1.442695
      %v1236 = vpow.pop %v1235
      %v1237 = vmul.f32 %v1227, 1.442695
      %v1238 = vpow.pop %v1237
      %v1239 = vmul.f32 %v1228, 1.442695
      %v1240 = vpow.pop %v1239
      %v1241 = vsel %vm1204, %v1230, 0.0
      %1242 = vadd.xlane.f32.xlu0 %v1241
      %v1243 = vpop.xlane.xlu0 %1242
      %v1244 = vsel %vm1204, %v1232, 0.0
      %1245 = vadd.xlane.f32.xlu0 %v1244
      %v1246 = vpop.xlane.xlu0 %1245
      %v1247 = vsel %vm1204, %v1234, 0.0
      %1248 = vadd.xlane.f32.xlu0 %v1247
      %v1249 = vpop.xlane.xlu0 %1248
      %v1250 = vsel %vm1204, %v1236, 0.0
      %1251 = vadd.xlane.f32.xlu0 %v1250
      %v1252 = vpop.xlane.xlu0 %1251
      %v1253 = vsel %vm1204, %v1238, 0.0
      %1254 = vadd.xlane.f32.xlu0 %v1253
      %v1255 = vpop.xlane.xlu0 %1254
      %v1256 = vsel %vm1204, %v1240, 0.0
      %1257 = vadd.xlane.f32.xlu0 %v1256
      %v1258 = vpop.xlane.xlu0 %1257
      %v1259 = vrcp.pop %v1243
      %v1260 = vrcp.pop %v1246
      %v1261 = vrcp.pop %v1249
      %v1262 = vrcp.pop %v1252
      %v1263 = vrcp.pop %v1255
      %v1264 = vrcp.pop %v1258
      %v1265 = vmul.f32 %v1230, %v1259
      %v1266 = vmul.f32 %v1232, %v1260
      %v1267 = vmul.f32 %v1234, %v1261
      %v1268 = vmul.f32 %v1236, %v1262
      %v1269 = vmul.f32 %v1238, %v1263
      %v1270 = vmul.f32 %v1240, %v1264
      %v1271 = vpack.c.bf16 %v1266, %v1265
      %v1272 = vpack.c.bf16 %v1268, %v1267
      %v1273 = vpack.c.bf16 %v1270, %v1269
      %v1274 = vunpack.c.h.b16 %v1166
      %v1275 = vpack.c.b16 %v1274, %v1274
      %v1277 = vsel %vm1204, %v1271, 0
      %v1280 = vsel %vm1204, %v1272, 0
      %v1283 = vsel %vm1204, %v1273, 0
      %vm1285 = vcmask 1043456
      %v1287 = vsel %vm1285, %v1275, 0
      %1289 = vmatpush.bf16.msra.mxu0 0
      %1290 = vmatpush.bf16.msra.mxu0 0
      %1291 = vmatpush.bf16.msra.mxu0 0
      %1292 = vmatpush.bf16.msra.mxu0 0
      %1293 = vmatpush.bf16.msra.mxu0 0
      %1294 = vmatpush.bf16.msra.mxu0 0
      %1295 = vmatpush.bf16.msra.mxu0 0
      %1296 = vmatpush.bf16.msra.mxu0 %v1287
      %1297 = vmatmul.bf16.gmra.mxu0 %v1277
      %v1298 = vpop.f32.mrf.mxu0
      %v1299 = vadd.f32 0.0, %v1298
      %v1300 = vpop.f32.mrf.mxu0
      %v1301 = vadd.f32 0.0, %v1300
      %1302 = vmatmul.bf16.gmra.mxu0 %v1280
      %v1303 = vpop.f32.mrf.mxu0
      %v1304 = vadd.f32 0.0, %v1303
      %v1305 = vpop.f32.mrf.mxu0
      %v1306 = vadd.f32 0.0, %v1305
      %1307 = vmatmul.bf16.gmra.mxu0 %v1283
      %v1308 = vpop.f32.mrf.mxu0
      %v1309 = vadd.f32 0.0, %v1308
      %v1310 = vpop.f32.mrf.mxu0
      %v1311 = vadd.f32 0.0, %v1310
      %1312 = vdwg.mxu0
      %vm1313 = vcmask 130112
      %v1314 = vsel %vm1313, %v1198, -inf
      %1315 = vmax.xlane.f32.xlu0 %v1314
      %v1316 = vpop.xlane.xlu0 %1315
      %v1317 = vsel %vm1313, %v1199, -inf
      %1318 = vmax.xlane.f32.xlu0 %v1317
      %v1319 = vpop.xlane.xlu0 %1318
      %v1320 = vsel %vm1313, %v1200, -inf
      %1321 = vmax.xlane.f32.xlu0 %v1320
      %v1322 = vpop.xlane.xlu0 %1321
      %v1323 = vsel %vm1313, %v1201, -inf
      %1324 = vmax.xlane.f32.xlu0 %v1323
      %v1325 = vpop.xlane.xlu0 %1324
      %v1326 = vsel %vm1313, %v1202, -inf
      %1327 = vmax.xlane.f32.xlu0 %v1326
      %v1328 = vpop.xlane.xlu0 %1327
      %v1329 = vsel %vm1313, %v1203, -inf
      %1330 = vmax.xlane.f32.xlu0 %v1329
      %v1331 = vpop.xlane.xlu0 %1330
      %v1332 = vsub.f32 %v1198, %v1316
      %v1333 = vsub.f32 %v1199, %v1319
      %v1334 = vsub.f32 %v1200, %v1322
      %v1335 = vsub.f32 %v1201, %v1325
      %v1336 = vsub.f32 %v1202, %v1328
      %v1337 = vsub.f32 %v1203, %v1331
      %v1338 = vmul.f32 %v1332, 1.442695
      %v1339 = vpow.pop %v1338
      %v1340 = vmul.f32 %v1333, 1.442695
      %v1341 = vpow.pop %v1340
      %v1342 = vmul.f32 %v1334, 1.442695
      %v1343 = vpow.pop %v1342
      %v1344 = vmul.f32 %v1335, 1.442695
      %v1345 = vpow.pop %v1344
      %v1346 = vmul.f32 %v1336, 1.442695
      %v1347 = vpow.pop %v1346
      %v1348 = vmul.f32 %v1337, 1.442695
      %v1349 = vpow.pop %v1348
      %1356 = vrot.lane.b32.xlu0 %v1339, 120
      %v1357 = vpop.permute.xlu0 %1356
      %1358 = vrot.lane.b32.xlu0 %v1341, 120
      %v1359 = vpop.permute.xlu0 %1358
      %1360 = vrot.lane.b32.xlu0 %v1343, 120
      %v1361 = vpop.permute.xlu0 %1360
      %1362 = vrot.lane.b32.xlu0 %v1345, 120
      %v1363 = vpop.permute.xlu0 %1362
      %1364 = vrot.lane.b32.xlu0 %v1347, 120
      %v1365 = vpop.permute.xlu0 %1364
      %1366 = vrot.lane.b32.xlu0 %v1349, 120
      %v1367 = vpop.permute.xlu0 %1366
      %v1374 = vsel %vm1204, %v1357, 0.0
      %1375 = vadd.xlane.f32.xlu0 %v1374
      %v1376 = vpop.xlane.xlu0 %1375
      %v1377 = vsel %vm1204, %v1359, 0.0
      %1378 = vadd.xlane.f32.xlu0 %v1377
      %v1379 = vpop.xlane.xlu0 %1378
      %v1380 = vsel %vm1204, %v1361, 0.0
      %1381 = vadd.xlane.f32.xlu0 %v1380
      %v1382 = vpop.xlane.xlu0 %1381
      %v1383 = vsel %vm1204, %v1363, 0.0
      %1384 = vadd.xlane.f32.xlu0 %v1383
      %v1385 = vpop.xlane.xlu0 %1384
      %v1386 = vsel %vm1204, %v1365, 0.0
      %1387 = vadd.xlane.f32.xlu0 %v1386
      %v1388 = vpop.xlane.xlu0 %1387
      %v1389 = vsel %vm1204, %v1367, 0.0
      %1390 = vadd.xlane.f32.xlu0 %v1389
      %v1391 = vpop.xlane.xlu0 %1390
      %v1392 = vrcp.pop %v1376
      %v1393 = vrcp.pop %v1379
      %v1394 = vrcp.pop %v1382
      %v1395 = vrcp.pop %v1385
      %v1396 = vrcp.pop %v1388
      %v1397 = vrcp.pop %v1391
      %v1398 = vmul.f32 %v1339, %v1392
      %v1399 = vmul.f32 %v1341, %v1393
      %v1400 = vmul.f32 %v1343, %v1394
      %v1401 = vmul.f32 %v1345, %v1395
      %v1402 = vmul.f32 %v1347, %v1396
      %v1403 = vmul.f32 %v1349, %v1397
      %v1404 = vpack.c.bf16 %v1399, %v1398
      %v1405 = vpack.c.bf16 %v1401, %v1400
      %v1406 = vpack.c.bf16 %v1403, %v1402
      %1410 = vrot.lane.b32.xlu0 %v1404, 120
      %v1411 = vpop.permute.xlu0 %1410
      %1412 = vrot.lane.b32.xlu0 %v1405, 120
      %v1413 = vpop.permute.xlu0 %1412
      %1414 = vrot.lane.b32.xlu0 %v1406, 120
      %v1415 = vpop.permute.xlu0 %1414
      %v1416 = vunpack.c.h.b16 %v1167
      %v1417 = vpack.c.b16 %v1416, %v1416
      %v1419 = vsel %vm1204, %v1411, 0
      %v1422 = vsel %vm1204, %v1413, 0
      %v1425 = vsel %vm1204, %v1415, 0
      %v1428 = vsel %vm1285, %v1417, 0
      %1430 = vmatpush.bf16.msra.mxu0 0
      %1431 = vmatpush.bf16.msra.mxu0 0
      %1432 = vmatpush.bf16.msra.mxu0 0
      %1433 = vmatpush.bf16.msra.mxu0 0
      %1434 = vmatpush.bf16.msra.mxu0 0
      %1435 = vmatpush.bf16.msra.mxu0 0
      %1436 = vmatpush.bf16.msra.mxu0 0
      %1437 = vmatpush.bf16.msra.mxu0 %v1428
      %1438 = vmatmul.bf16.gmra.mxu0 %v1419
      %v1439 = vpop.f32.mrf.mxu0
      %v1440 = vadd.f32 0.0, %v1439
      %v1441 = vpop.f32.mrf.mxu0
      %v1442 = vadd.f32 0.0, %v1441
      %1443 = vmatmul.bf16.gmra.mxu0 %v1422
      %v1444 = vpop.f32.mrf.mxu0
      %v1445 = vadd.f32 0.0, %v1444
      %v1446 = vpop.f32.mrf.mxu0
      %v1447 = vadd.f32 0.0, %v1446
      %1448 = vmatmul.bf16.gmra.mxu0 %v1425
      %v1449 = vpop.f32.mrf.mxu0
      %v1450 = vadd.f32 0.0, %v1449
      %v1451 = vpop.f32.mrf.mxu0
      %v1452 = vadd.f32 0.0, %v1451
      %1453 = vdwg.mxu0
      %v1454 = vpack.c.bf16 %v1301, %v1299
      %v1455 = vpack.c.bf16 %v1306, %v1304
      %v1456 = vpack.c.bf16 %v1311, %v1309
      %v1457 = vpack.c.bf16 %v1442, %v1440
      %v1458 = vpack.c.bf16 %v1447, %v1445
      %v1459 = vpack.c.bf16 %v1452, %v1450
      %s1460 = scalar_lea.vmem %s12, 128
      %v1461 = vld [vmem:[%s1460] sm:$0xf]
      %v1462 = vld [vmem:[%s1460 + $0x4] sm:$0xf]
      %v1463 = vld [vmem:[%s1460 + $0x8] sm:$0xf]
      %v1464 = vld [vmem:[%s1460 + $0xc] sm:$0xf]
      %v1465 = vld [vmem:[%s1460 + $0x10] sm:$0xf]
      %v1466 = vld [vmem:[%s1460 + $0x14] sm:$0xf]
      %v1467 = vld [vmem:[%s1460 + $0x18] sm:$0xf]
      %v1468 = vld [vmem:[%s1460 + $0x1c] sm:$0xf]
      %v1469 = vld [vmem:[%s1460 + $0x20] sm:$0xf]
      %v1470 = vld [vmem:[%s1460 + $0x24] sm:$0xf]
      %v1471 = vld [vmem:[%s1460 + $0x28] sm:$0xf]
      %v1472 = vld [vmem:[%s1460 + $0x2c] sm:$0xf]
      %v1473 = vld [vmem:[%s1460 + $0x30] sm:$0xf]
      %v1474 = vld [vmem:[%s1460 + $0x34] sm:$0xf]
      %v1475 = vld [vmem:[%s1460 + $0x38] sm:$0xf]
      %v1476 = vld [vmem:[%s1460 + $0x3c] sm:$0xf]
      %v1477 = vld [vmem:[%s13 + $0x2] sm:$0x1]
      %v1478 = vperm.slane %v1477, 0
      %v1495 = vunpack.c.l.b16 %v1461
      %v1496 = vunpack.c.l.b16 %v1462
      %v1497 = vunpack.c.l.b16 %v1463
      %v1498 = vunpack.c.l.b16 %v1464
      %v1499 = vunpack.c.l.b16 %v1465
      %v1500 = vunpack.c.l.b16 %v1466
      %v1501 = vunpack.c.l.b16 %v1467
      %v1502 = vunpack.c.l.b16 %v1468
      %v1503 = vunpack.c.l.b16 %v1469
      %v1504 = vunpack.c.l.b16 %v1470
      %v1505 = vunpack.c.l.b16 %v1471
      %v1506 = vunpack.c.l.b16 %v1472
      %v1507 = vunpack.c.l.b16 %v1473
      %v1508 = vunpack.c.l.b16 %v1474
      %v1509 = vunpack.c.l.b16 %v1475
      %v1510 = vunpack.c.l.b16 %v1476
      %v1511 = vpack.c.b16 %v1496, %v1495
      %v1512 = vpack.c.b16 %v1498, %v1497
      %v1513 = vpack.c.b16 %v1500, %v1499
      %v1514 = vpack.c.b16 %v1502, %v1501
      %v1515 = vpack.c.b16 %v1504, %v1503
      %v1516 = vpack.c.b16 %v1506, %v1505
      %v1517 = vpack.c.b16 %v1508, %v1507
      %v1518 = vpack.c.b16 %v1510, %v1509
      %1527 = vmatpush.bf16.msra.mxu0 %v1518
      %1528 = vmatpush.bf16.msra.mxu0 %v1517
      %1529 = vmatpush.bf16.msra.mxu0 %v1516
      %1530 = vmatpush.bf16.msra.mxu0 %v1515
      %1531 = vmatpush.bf16.msra.mxu0 %v1514
      %1532 = vmatpush.bf16.msra.mxu0 %v1513
      %1533 = vmatpush.bf16.msra.mxu0 %v1512
      %1534 = vmatpush.bf16.msra.mxu0 %v1511
      %1535 = vmatmul.bf16.gmra.mxu0 %v1454
      %v1536 = vpop.f32.mrf.mxu0
      %v1537 = vadd.f32 %v1478, %v1536
      %v1538 = vpop.f32.mrf.mxu0
      %v1539 = vadd.f32 %v1478, %v1538
      %1540 = vmatmul.bf16.gmra.mxu0 %v1455
      %v1541 = vpop.f32.mrf.mxu0
      %v1542 = vadd.f32 %v1478, %v1541
      %v1543 = vpop.f32.mrf.mxu0
      %v1544 = vadd.f32 %v1478, %v1543
      %1545 = vmatmul.bf16.gmra.mxu0 %v1456
      %v1546 = vpop.f32.mrf.mxu0
      %v1547 = vadd.f32 %v1478, %v1546
      %v1548 = vpop.f32.mrf.mxu0
      %v1549 = vadd.f32 %v1478, %v1548
      %1550 = vmatmul.bf16.gmra.mxu0 %v1457
      %v1551 = vpop.f32.mrf.mxu0
      %v1552 = vadd.f32 %v1478, %v1551
      %v1553 = vpop.f32.mrf.mxu0
      %v1554 = vadd.f32 %v1478, %v1553
      %1555 = vmatmul.bf16.gmra.mxu0 %v1458
      %v1556 = vpop.f32.mrf.mxu0
      %v1557 = vadd.f32 %v1478, %v1556
      %v1558 = vpop.f32.mrf.mxu0
      %v1559 = vadd.f32 %v1478, %v1558
      %1560 = vmatmul.bf16.gmra.mxu0 %v1459
      %v1561 = vpop.f32.mrf.mxu0
      %v1562 = vadd.f32 %v1478, %v1561
      %v1563 = vpop.f32.mrf.mxu0
      %v1564 = vadd.f32 %v1478, %v1563
      %1565 = vdwg.mxu0
      %v1566 = vadd.f32 %v1063, %v1537
      %v1567 = vadd.f32 %v1064, %v1539
      %v1568 = vadd.f32 %v1065, %v1542
      %v1569 = vadd.f32 %v1066, %v1544
      %v1570 = vadd.f32 %v1067, %v1547
      %v1571 = vadd.f32 %v1068, %v1549
      %v1572 = vadd.f32 %v1063, %v1552
      %v1573 = vadd.f32 %v1064, %v1554
      %v1574 = vadd.f32 %v1065, %v1557
      %v1575 = vadd.f32 %v1066, %v1559
      %v1576 = vadd.f32 %v1067, %v1562
      %v1577 = vadd.f32 %v1068, %v1564
      %v1578 = vpack.c.bf16 %v1567, %v1566
      %v1579 = vpack.c.bf16 %v1569, %v1568
      %v1580 = vpack.c.bf16 %v1571, %v1570
      %v1581 = vpack.c.bf16 %v1573, %v1572
      %v1582 = vpack.c.bf16 %v1575, %v1574
      %v1583 = vpack.c.bf16 %v1577, %v1576
      %s1584 = scalar_lea.vmem %s12, 192
      %v1585 = vld [vmem:[%s1584] sm:$0xf]
      %v1586 = vld [vmem:[%s1584 + $0x4] sm:$0xf]
      %v1587 = vld [vmem:[%s1584 + $0x8] sm:$0xf]
      %v1588 = vld [vmem:[%s1584 + $0xc] sm:$0xf]
      %v1589 = vld [vmem:[%s1584 + $0x10] sm:$0xf]
      %v1590 = vld [vmem:[%s1584 + $0x14] sm:$0xf]
      %v1591 = vld [vmem:[%s1584 + $0x18] sm:$0xf]
      %v1592 = vld [vmem:[%s1584 + $0x1c] sm:$0xf]
      %v1593 = vld [vmem:[%s1584 + $0x20] sm:$0xf]
      %v1594 = vld [vmem:[%s1584 + $0x24] sm:$0xf]
      %v1595 = vld [vmem:[%s1584 + $0x28] sm:$0xf]
      %v1596 = vld [vmem:[%s1584 + $0x2c] sm:$0xf]
      %v1597 = vld [vmem:[%s1584 + $0x30] sm:$0xf]
      %v1598 = vld [vmem:[%s1584 + $0x34] sm:$0xf]
      %v1599 = vld [vmem:[%s1584 + $0x38] sm:$0xf]
      %v1600 = vld [vmem:[%s1584 + $0x3c] sm:$0xf]
      %v1601 = vld [vmem:[%s13 + $0x3] sm:$0x1]
      %v1602 = vperm.slane %v1601, 0
      %v1619 = vunpack.c.l.b16 %v1585
      %v1620 = vunpack.c.l.b16 %v1586
      %v1621 = vunpack.c.l.b16 %v1587
      %v1622 = vunpack.c.l.b16 %v1588
      %v1623 = vunpack.c.l.b16 %v1589
      %v1624 = vunpack.c.l.b16 %v1590
      %v1625 = vunpack.c.l.b16 %v1591
      %v1626 = vunpack.c.l.b16 %v1592
      %v1627 = vunpack.c.l.b16 %v1593
      %v1628 = vunpack.c.l.b16 %v1594
      %v1629 = vunpack.c.l.b16 %v1595
      %v1630 = vunpack.c.l.b16 %v1596
      %v1631 = vunpack.c.l.b16 %v1597
      %v1632 = vunpack.c.l.b16 %v1598
      %v1633 = vunpack.c.l.b16 %v1599
      %v1634 = vunpack.c.l.b16 %v1600
      %v1635 = vpack.c.b16 %v1620, %v1619
      %v1636 = vpack.c.b16 %v1622, %v1621
      %v1637 = vpack.c.b16 %v1624, %v1623
      %v1638 = vpack.c.b16 %v1626, %v1625
      %v1639 = vpack.c.b16 %v1628, %v1627
      %v1640 = vpack.c.b16 %v1630, %v1629
      %v1641 = vpack.c.b16 %v1632, %v1631
      %v1642 = vpack.c.b16 %v1634, %v1633
      %1651 = vmatpush.bf16.msra.mxu0 %v1642
      %1652 = vmatpush.bf16.msra.mxu0 %v1641
      %1653 = vmatpush.bf16.msra.mxu0 %v1640
      %1654 = vmatpush.bf16.msra.mxu0 %v1639
      %1655 = vmatpush.bf16.msra.mxu0 %v1638
      %1656 = vmatpush.bf16.msra.mxu0 %v1637
      %1657 = vmatpush.bf16.msra.mxu0 %v1636
      %1658 = vmatpush.bf16.msra.mxu0 %v1635
      %1659 = vmatmul.bf16.gmra.mxu0 %v1578
      %v1660 = vpop.f32.mrf.mxu0
      %v1661 = vadd.f32 %v1602, %v1660
      %v1662 = vpop.f32.mrf.mxu0
      %v1663 = vadd.f32 %v1602, %v1662
      %1664 = vmatmul.bf16.gmra.mxu0 %v1579
      %v1665 = vpop.f32.mrf.mxu0
      %v1666 = vadd.f32 %v1602, %v1665
      %v1667 = vpop.f32.mrf.mxu0
      %v1668 = vadd.f32 %v1602, %v1667
      %1669 = vmatmul.bf16.gmra.mxu0 %v1580
      %v1670 = vpop.f32.mrf.mxu0
      %v1671 = vadd.f32 %v1602, %v1670
      %v1672 = vpop.f32.mrf.mxu0
      %v1673 = vadd.f32 %v1602, %v1672
      %1674 = vmatmul.bf16.gmra.mxu0 %v1581
      %v1675 = vpop.f32.mrf.mxu0
      %v1676 = vadd.f32 %v1602, %v1675
      %v1677 = vpop.f32.mrf.mxu0
      %v1678 = vadd.f32 %v1602, %v1677
      %1679 = vmatmul.bf16.gmra.mxu0 %v1582
      %v1680 = vpop.f32.mrf.mxu0
      %v1681 = vadd.f32 %v1602, %v1680
      %v1682 = vpop.f32.mrf.mxu0
      %v1683 = vadd.f32 %v1602, %v1682
      %1684 = vmatmul.bf16.gmra.mxu0 %v1583
      %v1685 = vpop.f32.mrf.mxu0
      %v1686 = vadd.f32 %v1602, %v1685
      %v1687 = vpop.f32.mrf.mxu0
      %v1688 = vadd.f32 %v1602, %v1687
      %1689 = vdwg.mxu0
      %v1690 = vxor.u32 %v1661, 2147483648
      %v1691 = vxor.u32 %v1663, 2147483648
      %v1692 = vxor.u32 %v1666, 2147483648
      %v1693 = vxor.u32 %v1668, 2147483648
      %v1694 = vxor.u32 %v1671, 2147483648
      %v1695 = vxor.u32 %v1673, 2147483648
      %v1696 = vxor.u32 %v1676, 2147483648
      %v1697 = vxor.u32 %v1678, 2147483648
      %v1698 = vxor.u32 %v1681, 2147483648
      %v1699 = vxor.u32 %v1683, 2147483648
      %v1700 = vxor.u32 %v1686, 2147483648
      %v1701 = vxor.u32 %v1688, 2147483648
      %v1702 = vmul.f32 %v1690, 1.442695
      %v1703 = vpow.pop %v1702
      %v1704 = vmul.f32 %v1691, 1.442695
      %v1705 = vpow.pop %v1704
      %v1706 = vmul.f32 %v1692, 1.442695
      %v1707 = vpow.pop %v1706
      %v1708 = vmul.f32 %v1693, 1.442695
      %v1709 = vpow.pop %v1708
      %v1710 = vmul.f32 %v1694, 1.442695
      %v1711 = vpow.pop %v1710
      %v1712 = vmul.f32 %v1695, 1.442695
      %v1713 = vpow.pop %v1712
      %v1714 = vmul.f32 %v1696, 1.442695
      %v1715 = vpow.pop %v1714
      %v1716 = vmul.f32 %v1697, 1.442695
      %v1717 = vpow.pop %v1716
      %v1718 = vmul.f32 %v1698, 1.442695
      %v1719 = vpow.pop %v1718
      %v1720 = vmul.f32 %v1699, 1.442695
      %v1721 = vpow.pop %v1720
      %v1722 = vmul.f32 %v1700, 1.442695
      %v1723 = vpow.pop %v1722
      %v1724 = vmul.f32 %v1701, 1.442695
      %v1725 = vpow.pop %v1724
      %v1726 = vadd.f32 %v1703, 1.0
      %v1727 = vadd.f32 %v1705, 1.0
      %v1728 = vadd.f32 %v1707, 1.0
      %v1729 = vadd.f32 %v1709, 1.0
      %v1730 = vadd.f32 %v1711, 1.0
      %v1731 = vadd.f32 %v1713, 1.0
      %v1732 = vadd.f32 %v1715, 1.0
      %v1733 = vadd.f32 %v1717, 1.0
      %v1734 = vadd.f32 %v1719, 1.0
      %v1735 = vadd.f32 %v1721, 1.0
      %v1736 = vadd.f32 %v1723, 1.0
      %v1737 = vadd.f32 %v1725, 1.0
      %v1738 = vrcp.pop %v1726
      %v1739 = vmul.f32 %v1726, %v1738
      %v1740 = vsub.f32 1.0, %v1739
      %v1741 = vmul.f32 %v1738, %v1740
      %v1742 = vadd.f32 %v1738, %v1741
      %vm1743 = vweird.f32 %v1726
      %vm1744 = vweird.f32 %v1738
      %vm1745 = vmor %vm1743, %vm1744
      %v1746 = vsel %vm1745, %v1738, %v1742
      %v1747 = vand.u32 2147483647, %v1726
      %vm1748 = vcmp.eq.f32.partialorder %v1747, 8.507059e+37
      %v1749 = vand.u32 %v1726, 2147483648
      %v1750 = vor.u32 1.1754944e-38, %v1749
      %v1751 = vsel %vm1748, %v1750, %v1746
      %v1752 = vmul.f32 1.0, %v1751
      %v1753 = vrcp.pop %v1727
      %v1754 = vmul.f32 %v1727, %v1753
      %v1755 = vsub.f32 1.0, %v1754
      %v1756 = vmul.f32 %v1753, %v1755
      %v1757 = vadd.f32 %v1753, %v1756
      %vm1758 = vweird.f32 %v1727
      %vm1759 = vweird.f32 %v1753
      %vm1760 = vmor %vm1758, %vm1759
      %v1761 = vsel %vm1760, %v1753, %v1757
      %v1762 = vand.u32 2147483647, %v1727
      %vm1763 = vcmp.eq.f32.partialorder %v1762, 8.507059e+37
      %v1764 = vand.u32 %v1727, 2147483648
      %v1765 = vor.u32 1.1754944e-38, %v1764
      %v1766 = vsel %vm1763, %v1765, %v1761
      %v1767 = vmul.f32 1.0, %v1766
      %v1768 = vrcp.pop %v1728
      %v1769 = vmul.f32 %v1728, %v1768
      %v1770 = vsub.f32 1.0, %v1769
      %v1771 = vmul.f32 %v1768, %v1770
      %v1772 = vadd.f32 %v1768, %v1771
      %vm1773 = vweird.f32 %v1728
      %vm1774 = vweird.f32 %v1768
      %vm1775 = vmor %vm1773, %vm1774
      %v1776 = vsel %vm1775, %v1768, %v1772
      %v1777 = vand.u32 2147483647, %v1728
      %vm1778 = vcmp.eq.f32.partialorder %v1777, 8.507059e+37
      %v1779 = vand.u32 %v1728, 2147483648
      %v1780 = vor.u32 1.1754944e-38, %v1779
      %v1781 = vsel %vm1778, %v1780, %v1776
      %v1782 = vmul.f32 1.0, %v1781
      %v1783 = vrcp.pop %v1729
      %v1784 = vmul.f32 %v1729, %v1783
      %v1785 = vsub.f32 1.0, %v1784
      %v1786 = vmul.f32 %v1783, %v1785
      %v1787 = vadd.f32 %v1783, %v1786
      %vm1788 = vweird.f32 %v1729
      %vm1789 = vweird.f32 %v1783
      %vm1790 = vmor %vm1788, %vm1789
      %v1791 = vsel %vm1790, %v1783, %v1787
      %v1792 = vand.u32 2147483647, %v1729
      %vm1793 = vcmp.eq.f32.partialorder %v1792, 8.507059e+37
      %v1794 = vand.u32 %v1729, 2147483648
      %v1795 = vor.u32 1.1754944e-38, %v1794
      %v1796 = vsel %vm1793, %v1795, %v1791
      %v1797 = vmul.f32 1.0, %v1796
      %v1798 = vrcp.pop %v1730
      %v1799 = vmul.f32 %v1730, %v1798
      %v1800 = vsub.f32 1.0, %v1799
      %v1801 = vmul.f32 %v1798, %v1800
      %v1802 = vadd.f32 %v1798, %v1801
      %vm1803 = vweird.f32 %v1730
      %vm1804 = vweird.f32 %v1798
      %vm1805 = vmor %vm1803, %vm1804
      %v1806 = vsel %vm1805, %v1798, %v1802
      %v1807 = vand.u32 2147483647, %v1730
      %vm1808 = vcmp.eq.f32.partialorder %v1807, 8.507059e+37
      %v1809 = vand.u32 %v1730, 2147483648
      %v1810 = vor.u32 1.1754944e-38, %v1809
      %v1811 = vsel %vm1808, %v1810, %v1806
      %v1812 = vmul.f32 1.0, %v1811
      %v1813 = vrcp.pop %v1731
      %v1814 = vmul.f32 %v1731, %v1813
      %v1815 = vsub.f32 1.0, %v1814
      %v1816 = vmul.f32 %v1813, %v1815
      %v1817 = vadd.f32 %v1813, %v1816
      %vm1818 = vweird.f32 %v1731
      %vm1819 = vweird.f32 %v1813
      %vm1820 = vmor %vm1818, %vm1819
      %v1821 = vsel %vm1820, %v1813, %v1817
      %v1822 = vand.u32 2147483647, %v1731
      %vm1823 = vcmp.eq.f32.partialorder %v1822, 8.507059e+37
      %v1824 = vand.u32 %v1731, 2147483648
      %v1825 = vor.u32 1.1754944e-38, %v1824
      %v1826 = vsel %vm1823, %v1825, %v1821
      %v1827 = vmul.f32 1.0, %v1826
      %v1828 = vrcp.pop %v1732
      %v1829 = vmul.f32 %v1732, %v1828
      %v1830 = vsub.f32 1.0, %v1829
      %v1831 = vmul.f32 %v1828, %v1830
      %v1832 = vadd.f32 %v1828, %v1831
      %vm1833 = vweird.f32 %v1732
      %vm1834 = vweird.f32 %v1828
      %vm1835 = vmor %vm1833, %vm1834
      %v1836 = vsel %vm1835, %v1828, %v1832
      %v1837 = vand.u32 2147483647, %v1732
      %vm1838 = vcmp.eq.f32.partialorder %v1837, 8.507059e+37
      %v1839 = vand.u32 %v1732, 2147483648
      %v1840 = vor.u32 1.1754944e-38, %v1839
      %v1841 = vsel %vm1838, %v1840, %v1836
      %v1842 = vmul.f32 1.0, %v1841
      %v1843 = vrcp.pop %v1733
      %v1844 = vmul.f32 %v1733, %v1843
      %v1845 = vsub.f32 1.0, %v1844
      %v1846 = vmul.f32 %v1843, %v1845
      %v1847 = vadd.f32 %v1843, %v1846
      %vm1848 = vweird.f32 %v1733
      %vm1849 = vweird.f32 %v1843
      %vm1850 = vmor %vm1848, %vm1849
      %v1851 = vsel %vm1850, %v1843, %v1847
      %v1852 = vand.u32 2147483647, %v1733
      %vm1853 = vcmp.eq.f32.partialorder %v1852, 8.507059e+37
      %v1854 = vand.u32 %v1733, 2147483648
      %v1855 = vor.u32 1.1754944e-38, %v1854
      %v1856 = vsel %vm1853, %v1855, %v1851
      %v1857 = vmul.f32 1.0, %v1856
      %v1858 = vrcp.pop %v1734
      %v1859 = vmul.f32 %v1734, %v1858
      %v1860 = vsub.f32 1.0, %v1859
      %v1861 = vmul.f32 %v1858, %v1860
      %v1862 = vadd.f32 %v1858, %v1861
      %vm1863 = vweird.f32 %v1734
      %vm1864 = vweird.f32 %v1858
      %vm1865 = vmor %vm1863, %vm1864
      %v1866 = vsel %vm1865, %v1858, %v1862
      %v1867 = vand.u32 2147483647, %v1734
      %vm1868 = vcmp.eq.f32.partialorder %v1867, 8.507059e+37
      %v1869 = vand.u32 %v1734, 2147483648
      %v1870 = vor.u32 1.1754944e-38, %v1869
      %v1871 = vsel %vm1868, %v1870, %v1866
      %v1872 = vmul.f32 1.0, %v1871
      %v1873 = vrcp.pop %v1735
      %v1874 = vmul.f32 %v1735, %v1873
      %v1875 = vsub.f32 1.0, %v1874
      %v1876 = vmul.f32 %v1873, %v1875
      %v1877 = vadd.f32 %v1873, %v1876
      %vm1878 = vweird.f32 %v1735
      %vm1879 = vweird.f32 %v1873
      %vm1880 = vmor %vm1878, %vm1879
      %v1881 = vsel %vm1880, %v1873, %v1877
      %v1882 = vand.u32 2147483647, %v1735
      %vm1883 = vcmp.eq.f32.partialorder %v1882, 8.507059e+37
      %v1884 = vand.u32 %v1735, 2147483648
      %v1885 = vor.u32 1.1754944e-38, %v1884
      %v1886 = vsel %vm1883, %v1885, %v1881
      %v1887 = vmul.f32 1.0, %v1886
      %v1888 = vrcp.pop %v1736
      %v1889 = vmul.f32 %v1736, %v1888
      %v1890 = vsub.f32 1.0, %v1889
      %v1891 = vmul.f32 %v1888, %v1890
      %v1892 = vadd.f32 %v1888, %v1891
      %vm1893 = vweird.f32 %v1736
      %vm1894 = vweird.f32 %v1888
      %vm1895 = vmor %vm1893, %vm1894
      %v1896 = vsel %vm1895, %v1888, %v1892
      %v1897 = vand.u32 2147483647, %v1736
      %vm1898 = vcmp.eq.f32.partialorder %v1897, 8.507059e+37
      %v1899 = vand.u32 %v1736, 2147483648
      %v1900 = vor.u32 1.1754944e-38, %v1899
      %v1901 = vsel %vm1898, %v1900, %v1896
      %v1902 = vmul.f32 1.0, %v1901
      %v1903 = vrcp.pop %v1737
      %v1904 = vmul.f32 %v1737, %v1903
      %v1905 = vsub.f32 1.0, %v1904
      %v1906 = vmul.f32 %v1903, %v1905
      %v1907 = vadd.f32 %v1903, %v1906
      %vm1908 = vweird.f32 %v1737
      %vm1909 = vweird.f32 %v1903
      %vm1910 = vmor %vm1908, %vm1909
      %v1911 = vsel %vm1910, %v1903, %v1907
      %v1912 = vand.u32 2147483647, %v1737
      %vm1913 = vcmp.eq.f32.partialorder %v1912, 8.507059e+37
      %v1914 = vand.u32 %v1737, 2147483648
      %v1915 = vor.u32 1.1754944e-38, %v1914
      %v1916 = vsel %vm1913, %v1915, %v1911
      %v1917 = vmul.f32 1.0, %v1916
      %v1918 = vmul.f32 %v1661, %v1752
      %v1919 = vmul.f32 %v1663, %v1767
      %v1920 = vmul.f32 %v1666, %v1782
      %v1921 = vmul.f32 %v1668, %v1797
      %v1922 = vmul.f32 %v1671, %v1812
      %v1923 = vmul.f32 %v1673, %v1827
      %v1924 = vmul.f32 %v1676, %v1842
      %v1925 = vmul.f32 %v1678, %v1857
      %v1926 = vmul.f32 %v1681, %v1872
      %v1927 = vmul.f32 %v1683, %v1887
      %v1928 = vmul.f32 %v1686, %v1902
      %v1929 = vmul.f32 %v1688, %v1917
      %v1930 = vpack.c.bf16 %v1919, %v1918
      %v1931 = vpack.c.bf16 %v1921, %v1920
      %v1932 = vpack.c.bf16 %v1923, %v1922
      %v1933 = vpack.c.bf16 %v1925, %v1924
      %v1934 = vpack.c.bf16 %v1927, %v1926
      %v1935 = vpack.c.bf16 %v1929, %v1928
      %s1936 = scalar_lea.vmem %s12, 256
      %v1937 = vld [vmem:[%s1936] sm:$0xf]
      %v1938 = vld [vmem:[%s1936 + $0x4] sm:$0xf]
      %v1939 = vld [vmem:[%s1936 + $0x8] sm:$0xf]
      %v1940 = vld [vmem:[%s1936 + $0xc] sm:$0xf]
      %v1941 = vld [vmem:[%s1936 + $0x10] sm:$0xf]
      %v1942 = vld [vmem:[%s1936 + $0x14] sm:$0xf]
      %v1943 = vld [vmem:[%s1936 + $0x18] sm:$0xf]
      %v1944 = vld [vmem:[%s1936 + $0x1c] sm:$0xf]
      %v1945 = vld [vmem:[%s1936 + $0x20] sm:$0xf]
      %v1946 = vld [vmem:[%s1936 + $0x24] sm:$0xf]
      %v1947 = vld [vmem:[%s1936 + $0x28] sm:$0xf]
      %v1948 = vld [vmem:[%s1936 + $0x2c] sm:$0xf]
      %v1949 = vld [vmem:[%s1936 + $0x30] sm:$0xf]
      %v1950 = vld [vmem:[%s1936 + $0x34] sm:$0xf]
      %v1951 = vld [vmem:[%s1936 + $0x38] sm:$0xf]
      %v1952 = vld [vmem:[%s1936 + $0x3c] sm:$0xf]
      %v1953 = vld [vmem:[%s13 + $0x4] sm:$0x1]
      %v1954 = vperm.slane %v1953, 0
      %v1971 = vunpack.c.l.b16 %v1937
      %v1972 = vunpack.c.l.b16 %v1938
      %v1973 = vunpack.c.l.b16 %v1939
      %v1974 = vunpack.c.l.b16 %v1940
      %v1975 = vunpack.c.l.b16 %v1941
      %v1976 = vunpack.c.l.b16 %v1942
      %v1977 = vunpack.c.l.b16 %v1943
      %v1978 = vunpack.c.l.b16 %v1944
      %v1979 = vunpack.c.l.b16 %v1945
      %v1980 = vunpack.c.l.b16 %v1946
      %v1981 = vunpack.c.l.b16 %v1947
      %v1982 = vunpack.c.l.b16 %v1948
      %v1983 = vunpack.c.l.b16 %v1949
      %v1984 = vunpack.c.l.b16 %v1950
      %v1985 = vunpack.c.l.b16 %v1951
      %v1986 = vunpack.c.l.b16 %v1952
      %v1987 = vpack.c.b16 %v1972, %v1971
      %v1988 = vpack.c.b16 %v1974, %v1973
      %v1989 = vpack.c.b16 %v1976, %v1975
      %v1990 = vpack.c.b16 %v1978, %v1977
      %v1991 = vpack.c.b16 %v1980, %v1979
      %v1992 = vpack.c.b16 %v1982, %v1981
      %v1993 = vpack.c.b16 %v1984, %v1983
      %v1994 = vpack.c.b16 %v1986, %v1985
      %2003 = vmatpush.bf16.msra.mxu0 %v1994
      %2004 = vmatpush.bf16.msra.mxu0 %v1993
      %2005 = vmatpush.bf16.msra.mxu0 %v1992
      %2006 = vmatpush.bf16.msra.mxu0 %v1991
      %2007 = vmatpush.bf16.msra.mxu0 %v1990
      %2008 = vmatpush.bf16.msra.mxu0 %v1989
      %2009 = vmatpush.bf16.msra.mxu0 %v1988
      %2010 = vmatpush.bf16.msra.mxu0 %v1987
      %2011 = vmatmul.bf16.gmra.mxu0 %v1930
      %v2012 = vpop.f32.mrf.mxu0
      %v2013 = vadd.f32 %v1954, %v2012
      %v2014 = vpop.f32.mrf.mxu0
      %v2015 = vadd.f32 %v1954, %v2014
      %2016 = vmatmul.bf16.gmra.mxu0 %v1931
      %v2017 = vpop.f32.mrf.mxu0
      %v2018 = vadd.f32 %v1954, %v2017
      %v2019 = vpop.f32.mrf.mxu0
      %v2020 = vadd.f32 %v1954, %v2019
      %2021 = vmatmul.bf16.gmra.mxu0 %v1932
      %v2022 = vpop.f32.mrf.mxu0
      %v2023 = vadd.f32 %v1954, %v2022
      %v2024 = vpop.f32.mrf.mxu0
      %v2025 = vadd.f32 %v1954, %v2024
      %2026 = vmatmul.bf16.gmra.mxu0 %v1933
      %v2027 = vpop.f32.mrf.mxu0
      %v2028 = vadd.f32 %v1954, %v2027
      %v2029 = vpop.f32.mrf.mxu0
      %v2030 = vadd.f32 %v1954, %v2029
      %2031 = vmatmul.bf16.gmra.mxu0 %v1934
      %v2032 = vpop.f32.mrf.mxu0
      %v2033 = vadd.f32 %v1954, %v2032
      %v2034 = vpop.f32.mrf.mxu0
      %v2035 = vadd.f32 %v1954, %v2034
      %2036 = vmatmul.bf16.gmra.mxu0 %v1935
      %v2037 = vpop.f32.mrf.mxu0
      %v2038 = vadd.f32 %v1954, %v2037
      %v2039 = vpop.f32.mrf.mxu0
      %v2040 = vadd.f32 %v1954, %v2039
      %2041 = vdwg.mxu0
      %v2042 = vadd.f32 %v1566, %v2013
      %v2043 = vadd.f32 %v1567, %v2015
      %v2044 = vadd.f32 %v1568, %v2018
      %v2045 = vadd.f32 %v1569, %v2020
      %v2046 = vadd.f32 %v1570, %v2023
      %v2047 = vadd.f32 %v1571, %v2025
      %v2048 = vadd.f32 %v1572, %v2028
      %v2049 = vadd.f32 %v1573, %v2030
      %v2050 = vadd.f32 %v1574, %v2033
      %v2051 = vadd.f32 %v1575, %v2035
      %v2052 = vadd.f32 %v1576, %v2038
      %v2053 = vadd.f32 %v1577, %v2040
      %v2054 = vpack.c.bf16 %v2043, %v2042
      %v2055 = vpack.c.bf16 %v2045, %v2044
      %v2056 = vpack.c.bf16 %v2047, %v2046
      %v2057 = vpack.c.bf16 %v2049, %v2048
      %v2058 = vpack.c.bf16 %v2051, %v2050
      %v2059 = vpack.c.bf16 %v2053, %v2052
      %s2060 = scalar_lea.vmem %s12, 320
      %v2061 = vld [vmem:[%s2060] sm:$0xf]
      %v2062 = vld [vmem:[%s2060 + $0x4] sm:$0xf]
      %v2063 = vld [vmem:[%s2060 + $0x8] sm:$0xf]
      %v2064 = vld [vmem:[%s2060 + $0xc] sm:$0xf]
      %v2065 = vld [vmem:[%s2060 + $0x10] sm:$0xf]
      %v2066 = vld [vmem:[%s2060 + $0x14] sm:$0xf]
      %v2067 = vld [vmem:[%s2060 + $0x18] sm:$0xf]
      %v2068 = vld [vmem:[%s2060 + $0x1c] sm:$0xf]
      %v2069 = vld [vmem:[%s2060 + $0x20] sm:$0xf]
      %v2070 = vld [vmem:[%s2060 + $0x24] sm:$0xf]
      %v2071 = vld [vmem:[%s2060 + $0x28] sm:$0xf]
      %v2072 = vld [vmem:[%s2060 + $0x2c] sm:$0xf]
      %v2073 = vld [vmem:[%s2060 + $0x30] sm:$0xf]
      %v2074 = vld [vmem:[%s2060 + $0x34] sm:$0xf]
      %v2075 = vld [vmem:[%s2060 + $0x38] sm:$0xf]
      %v2076 = vld [vmem:[%s2060 + $0x3c] sm:$0xf]
      %v2077 = vld [vmem:[%s13 + $0x5] sm:$0x1]
      %v2078 = vperm.slane %v2077, 0
      %v2095 = vunpack.c.l.b16 %v2061
      %v2096 = vunpack.c.l.b16 %v2062
      %v2097 = vunpack.c.l.b16 %v2063
      %v2098 = vunpack.c.l.b16 %v2064
      %v2099 = vunpack.c.l.b16 %v2065
      %v2100 = vunpack.c.l.b16 %v2066
      %v2101 = vunpack.c.l.b16 %v2067
      %v2102 = vunpack.c.l.b16 %v2068
      %v2103 = vunpack.c.l.b16 %v2069
      %v2104 = vunpack.c.l.b16 %v2070
      %v2105 = vunpack.c.l.b16 %v2071
      %v2106 = vunpack.c.l.b16 %v2072
      %v2107 = vunpack.c.l.b16 %v2073
      %v2108 = vunpack.c.l.b16 %v2074
      %v2109 = vunpack.c.l.b16 %v2075
      %v2110 = vunpack.c.l.b16 %v2076
      %v2111 = vpack.c.b16 %v2096, %v2095
      %v2112 = vpack.c.b16 %v2098, %v2097
      %v2113 = vpack.c.b16 %v2100, %v2099
      %v2114 = vpack.c.b16 %v2102, %v2101
      %v2115 = vpack.c.b16 %v2104, %v2103
      %v2116 = vpack.c.b16 %v2106, %v2105
      %v2117 = vpack.c.b16 %v2108, %v2107
      %v2118 = vpack.c.b16 %v2110, %v2109
      %2127 = vmatpush.bf16.msra.mxu0 %v2118
      %2128 = vmatpush.bf16.msra.mxu0 %v2117
      %2129 = vmatpush.bf16.msra.mxu0 %v2116
      %2130 = vmatpush.bf16.msra.mxu0 %v2115
      %2131 = vmatpush.bf16.msra.mxu0 %v2114
      %2132 = vmatpush.bf16.msra.mxu0 %v2113
      %2133 = vmatpush.bf16.msra.mxu0 %v2112
      %2134 = vmatpush.bf16.msra.mxu0 %v2111
      %2135 = vmatmul.bf16.gmra.mxu0 %v2054
      %v2136 = vpop.f32.mrf.mxu0
      %v2137 = vadd.f32 %v2078, %v2136
      %v2138 = vpop.f32.mrf.mxu0
      %v2139 = vadd.f32 %v2078, %v2138
      %2140 = vmatmul.bf16.gmra.mxu0 %v2055
      %v2141 = vpop.f32.mrf.mxu0
      %v2142 = vadd.f32 %v2078, %v2141
      %v2143 = vpop.f32.mrf.mxu0
      %v2144 = vadd.f32 %v2078, %v2143
      %2145 = vmatmul.bf16.gmra.mxu0 %v2056
      %v2146 = vpop.f32.mrf.mxu0
      %v2147 = vadd.f32 %v2078, %v2146
      %v2148 = vpop.f32.mrf.mxu0
      %v2149 = vadd.f32 %v2078, %v2148
      %2150 = vmatmul.bf16.gmra.mxu0 %v2057
      %v2151 = vpop.f32.mrf.mxu0
      %v2152 = vadd.f32 %v2078, %v2151
      %v2153 = vpop.f32.mrf.mxu0
      %v2154 = vadd.f32 %v2078, %v2153
      %2155 = vmatmul.bf16.gmra.mxu0 %v2058
      %v2156 = vpop.f32.mrf.mxu0
      %v2157 = vadd.f32 %v2078, %v2156
      %v2158 = vpop.f32.mrf.mxu0
      %v2159 = vadd.f32 %v2078, %v2158
      %2160 = vmatmul.bf16.gmra.mxu0 %v2059
      %v2161 = vpop.f32.mrf.mxu0
      %v2162 = vadd.f32 %v2078, %v2161
      %v2163 = vpop.f32.mrf.mxu0
      %v2164 = vadd.f32 %v2078, %v2163
      %2165 = vdwg.mxu0
      %v2166 = vsub.f32 %v2152, %v2137
      %v2167 = vsub.f32 %v2154, %v2139
      %v2168 = vsub.f32 %v2157, %v2142
      %v2169 = vsub.f32 %v2159, %v2144
      %v2170 = vsub.f32 %v2162, %v2147
      %v2171 = vsub.f32 %v2164, %v2149
      %v2172 = vmul.f32 %v2166, 7.5
      %v2173 = vmul.f32 %v2167, 7.5
      %v2174 = vmul.f32 %v2168, 7.5
      %v2175 = vmul.f32 %v2169, 7.5
      %v2176 = vmul.f32 %v2170, 7.5
      %v2177 = vmul.f32 %v2171, 7.5
      %v2178 = vadd.f32 %v2137, %v2172
      %v2179 = vadd.f32 %v2139, %v2173
      %v2180 = vadd.f32 %v2142, %v2174
      %v2181 = vadd.f32 %v2144, %v2175
      %v2182 = vadd.f32 %v2147, %v2176
      %v2183 = vadd.f32 %v2149, %v2177
      %p2184 = scmp.eq.s32.totalorder %s27, 1
      %s2185 = scalar_select %p2184, 1.0004252, 1.1513792
      %s2186 = scalar_select %p2184, -0.029167159, -0.5422681
      %v2187 = vstv %s2185
      %v2188 = vmul.f32 %v2187, %v964
      %v2189 = vmul.f32 %v2187, %v965
      %v2190 = vmul.f32 %v2187, %v966
      %v2191 = vmul.f32 %v2187, %v967
      %v2192 = vmul.f32 %v2187, %v968
      %v2193 = vmul.f32 %v2187, %v969
      %v2194 = vstv %s2186
      %v2195 = vmul.f32 %v2194, %v2178
      %v2196 = vmul.f32 %v2194, %v2179
      %v2197 = vmul.f32 %v2194, %v2180
      %v2198 = vmul.f32 %v2194, %v2181
      %v2199 = vmul.f32 %v2194, %v2182
      %v2200 = vmul.f32 %v2194, %v2183
      %v2201 = vadd.f32 %v2188, %v2195
      %v2202 = vadd.f32 %v2189, %v2196
      %v2203 = vadd.f32 %v2190, %v2197
      %v2204 = vadd.f32 %v2191, %v2198
      %v2205 = vadd.f32 %v2192, %v2199
      %v2206 = vadd.f32 %v2193, %v2200
      %2207 = vst [vmem:[#allocation2] sm:$0xff] %v2201
      %2208 = vst [vmem:[#allocation2 + $0x8] sm:$0xff] %v2202
      %2209 = vst [vmem:[#allocation2 + $0x10] sm:$0xff] %v2203
      %2210 = vst [vmem:[#allocation2 + $0x18] sm:$0xff] %v2204
      %2211 = vst [vmem:[#allocation2 + $0x20] sm:$0xff] %v2205
      %2212 = vst [vmem:[#allocation2 + $0x28] sm:$0xff] %v2206
      // Predicated region
      $region89: #{prompt_model_forward.1} parent=83 // pred_check
        %p2213 = pneg %p2184
      $region90: #{prompt_model_forward.1} parent=83 // pred_check_branch
        %2215 = sbr.rel (%p2213) target = $region92
      $region91: #{prompt_model_forward.1} parent=83 // pred_region
        %v2216 = vmul.f32 %v2201, 5.4899807
        %v2217 = vmul.f32 %v2202, 5.4899807
        %v2218 = vmul.f32 %v2203, 5.4899807
        %v2219 = vmul.f32 %v2204, 5.4899807
        %v2220 = vmul.f32 %v2205, 5.4899807
        %v2221 = vmul.f32 %v2206, 5.4899807
        %v2222 = vpack.c.bf16 %v2217, %v2216
        %v2223 = vpack.c.bf16 %v2219, %v2218
        %v2224 = vpack.c.bf16 %v2221, %v2220
        %v2225 = vld [vmem:[%s14] sm:$0xf]
        %v2226 = vld [vmem:[%s14 + $0x4] sm:$0xf]
        %v2227 = vld [vmem:[%s14 + $0x8] sm:$0xf]
        %v2228 = vld [vmem:[%s14 + $0xc] sm:$0xf]
        %v2229 = vld [vmem:[%s14 + $0x10] sm:$0xf]
        %v2230 = vld [vmem:[%s14 + $0x14] sm:$0xf]
        %v2231 = vld [vmem:[%s14 + $0x18] sm:$0xf]
        %v2232 = vld [vmem:[%s14 + $0x1c] sm:$0xf]
        %v2233 = vld [vmem:[%s14 + $0x20] sm:$0xf]
        %v2234 = vld [vmem:[%s14 + $0x24] sm:$0xf]
        %v2235 = vld [vmem:[%s14 + $0x28] sm:$0xf]
        %v2236 = vld [vmem:[%s14 + $0x2c] sm:$0xf]
        %v2237 = vld [vmem:[%s14 + $0x30] sm:$0xf]
        %v2238 = vld [vmem:[%s14 + $0x34] sm:$0xf]
        %v2239 = vld [vmem:[%s14 + $0x38] sm:$0xf]
        %v2240 = vld [vmem:[%s14 + $0x3c] sm:$0xf]
        %v2241 = vld [vmem:[%s15] sm:$0x1]
        %v2243 = vperm.slane %v2241, 0
        %v2261 = vunpack.c.l.b16 %v2225
        %v2262 = vunpack.c.l.b16 %v2226
        %v2263 = vunpack.c.l.b16 %v2227
        %v2264 = vunpack.c.l.b16 %v2228
        %v2265 = vunpack.c.l.b16 %v2229
        %v2266 = vunpack.c.l.b16 %v2230
        %v2267 = vunpack.c.l.b16 %v2231
        %v2268 = vunpack.c.l.b16 %v2232
        %v2269 = vunpack.c.l.b16 %v2233
        %v2270 = vunpack.c.l.b16 %v2234
        %v2271 = vunpack.c.l.b16 %v2235
        %v2272 = vunpack.c.l.b16 %v2236
        %v2273 = vunpack.c.l.b16 %v2237
        %v2274 = vunpack.c.l.b16 %v2238
        %v2275 = vunpack.c.l.b16 %v2239
        %v2276 = vunpack.c.l.b16 %v2240
        %v2277 = vpack.c.b16 %v2262, %v2261
        %v2278 = vpack.c.b16 %v2264, %v2263
        %v2279 = vpack.c.b16 %v2266, %v2265
        %v2280 = vpack.c.b16 %v2268, %v2267
        %v2281 = vpack.c.b16 %v2270, %v2269
        %v2282 = vpack.c.b16 %v2272, %v2271
        %v2283 = vpack.c.b16 %v2274, %v2273
        %v2284 = vpack.c.b16 %v2276, %v2275
        %2293 = vmatpush.bf16.msra.mxu0 %v2284
        %2294 = vmatpush.bf16.msra.mxu0 %v2283
        %2295 = vmatpush.bf16.msra.mxu0 %v2282
        %2296 = vmatpush.bf16.msra.mxu0 %v2281
        %2297 = vmatpush.bf16.msra.mxu0 %v2280
        %2298 = vmatpush.bf16.msra.mxu0 %v2279
        %2299 = vmatpush.bf16.msra.mxu0 %v2278
        %2300 = vmatpush.bf16.msra.mxu0 %v2277
        %2301 = vmatmul.bf16.gmra.mxu0 %v2222
        %v2302 = vpop.f32.mrf.mxu0
        %v2303 = vadd.f32 %v2243, %v2302
        %v2304 = vpop.f32.mrf.mxu0
        %v2305 = vadd.f32 %v2243, %v2304
        %2306 = vmatmul.bf16.gmra.mxu0 %v2223
        %v2307 = vpop.f32.mrf.mxu0
        %v2308 = vadd.f32 %v2243, %v2307
        %v2309 = vpop.f32.mrf.mxu0
        %v2310 = vadd.f32 %v2243, %v2309
        %2311 = vmatmul.bf16.gmra.mxu0 %v2224
        %v2312 = vpop.f32.mrf.mxu0
        %v2313 = vadd.f32 %v2243, %v2312
        %v2314 = vpop.f32.mrf.mxu0
        %v2315 = vadd.f32 %v2243, %v2314
        %2316 = vdwg.mxu0
        %v2317 = vtanh.pop %v2303
        %v2318 = vtanh.pop %v2305
        %v2319 = vtanh.pop %v2308
        %v2320 = vtanh.pop %v2310
        %v2321 = vtanh.pop %v2313
        %v2322 = vtanh.pop %v2315
        %2323 = vst [vmem:[%s16] sm:$0xff] %v2317
        %2324 = vst [vmem:[%s16 + $0x8] sm:$0xff] %v2318
        %2325 = vst [vmem:[%s16 + $0x10] sm:$0xff] %v2319
        %2326 = vst [vmem:[%s16 + $0x18] sm:$0xff] %v2320
        %2327 = vst [vmem:[%s16 + $0x20] sm:$0xff] %v2321
        %2328 = vst [vmem:[%s16 + $0x28] sm:$0xff] %v2322
      $region92: #{prompt_model_forward.1} parent=83 // pred_fallthru
        _
      // Predicated region
      $region93: #{prompt_model_forward.1} parent=83 // pred_check
        %p2329 = pneg %p376
      $region94: #{prompt_model_forward.1} parent=83 // pred_check_branch
        %2331 = sbr.rel (%p2329) target = $region96
      $region95: #{prompt_model_forward.1} parent=83 // pred_region
        _
      $region96: #{prompt_model_forward.1} parent=83 // pred_fallthru
        _
      // Predicated region
      $region97: #{prompt_model_forward.1} parent=83 // pred_check
        %p2332 = pneg %p376
      $region98: #{prompt_model_forward.1} parent=83 // pred_check_branch
        %2334 = sbr.rel (%p2332) target = $region100
      $region99: #{prompt_model_forward.1} parent=83 // pred_region
        _
      $region100: #{prompt_model_forward.1} parent=83 // pred_fallthru
        _
    $region84: #{prompt_model_forward.1} parent=5 // pred_fallthru
      _
    %p2335 = scmp.le.s32.totalorder 2, %s22
    // Predicated region
    $region101: #{prompt_model_forward.1} parent=5 // pred_check
      %p2336 = pneg %p2335
    $region102: #{prompt_model_forward.1} parent=5 // pred_check_branch
      %2338 = sbr.rel (%p2336) target = $region104
    $region103: #{prompt_model_forward.1} parent=5 // pred_region
      %s2339 = ssub.s32 %s22, 2
    $region104: #{prompt_model_forward.1} parent=5 // pred_fallthru
      _
  $region6: #{prompt_model_forward.1} parent=0 // loop_footer
    %s26 = sadd.s32 1, %s22
  $region7: #{prompt_model_forward.1} parent=0 // loop_footer_branch
    %21 = sbr.rel target = $region3
  $region8: #{prompt_model_forward.1} parent=0 // loop_exit
    _

</llo_original>
